<compile_context>
chip_gen: v7x
topology: tpu7x:2x2x1
jax: 0.10.0
libtpu: 0.0.40
codegen_flags: <defaults>
</compile_context>

<pallas_src>
import functools

import jax
import jax.numpy as jnp
import numpy as np
from jax.experimental import pallas as pl
from jax.experimental.pallas import tpu as pltpu


def conv_relu_kernel(x_ref, w_ref, b_ref, o_ref, *, KH, KW, Cin, Cout, Ho, Wo):
    # x_ref: (1, Cin, H, W)            f32 VMEM  raw NCHW input (no padding needed)
    # w_ref: (Cout*Cin*KH*KW,)         f32 SMEM  scalar taps (OIHW, row-major flat)
    # b_ref: (Cout,)                   f32 SMEM
    # o_ref: (1, Cout, Ho, Wo)         f32 VMEM  valid conv window, ReLU applied

    # One (Ho, Wo) accumulator per output channel, seeded with the bias.
    accs = [jnp.full((Ho, Wo), b_ref[co], dtype=jnp.float32) for co in range(Cout)]

    # Direct conv: each tap window is sliced ONCE and reused by all Cout.
    for ci in range(Cin):
        for kh in range(KH):
            for kw in range(KW):
                tap = x_ref[0, ci, kh:kh + Ho, kw:kw + Wo]   # static 2-D window
                for co in range(Cout):
                    w = w_ref[((co * Cin + ci) * KH + kh) * KW + kw]
                    accs[co] = accs[co] + w * tap

    # Merged epilogue: one ReLU over the stacked slab, one store (valid window
    # only — no post-kernel crop needed).
    o_ref[0] = jnp.maximum(jnp.stack(accs, axis=0), 0.0)


@jax.jit
def conv2d_relu_pallas(x_nchw, w_oihw, b):
    """x_nchw: (1, Cin, H, W) f32; w_oihw: (Cout, Cin, KH, KW) f32; b: (Cout,) f32."""
    N, Cin, H, W = x_nchw.shape
    Cout, Cin_w, KH, KW = w_oihw.shape
    assert N == 1 and Cin_w == Cin          # module spec: x1 = (1, 3, 32, 32)
    Ho, Wo = H - KH + 1, W - KW + 1

    kernel = functools.partial(conv_relu_kernel, KH=KH, KW=KW,
                               Cin=Cin, Cout=Cout, Ho=Ho, Wo=Wo)

    flops = 2 * N * Cout * Ho * Wo * Cin * KH * KW
    bytes_accessed = 4 * (x_nchw.size + w_oihw.size + b.size + N * Cout * Ho * Wo)

    return pl.pallas_call(
        kernel,
        out_shape=jax.ShapeDtypeStruct((N, Cout, Ho, Wo), jnp.float32),
        in_specs=[
            pl.BlockSpec(memory_space=pltpu.MemorySpace.VMEM),   # x (whole array)
            pl.BlockSpec(memory_space=pltpu.MemorySpace.SMEM),   # weights (scalars)
            pl.BlockSpec(memory_space=pltpu.MemorySpace.SMEM),   # bias (scalars)
        ],
        out_specs=pl.BlockSpec(memory_space=pltpu.MemorySpace.VMEM),
        cost_estimate=pl.CostEstimate(flops=flops, transcendentals=0,
                                      bytes_accessed=bytes_accessed),
    )(x_nchw, w_oihw.reshape(-1), b)   # reshape is a free bitcast under jit


def reference_conv_relu(x_nchw, w_oihw, b):
    out = jax.lax.conv_general_dilated(
        x_nchw, w_oihw, window_strides=(1, 1), padding="VALID",
        dimension_numbers=("NCHW", "OIHW", "NCHW"))
    return jnp.maximum(out + b.reshape(1, -1, 1, 1), 0.0)


if __name__ == "__main__":
    key = jax.random.PRNGKey(0)
    kx, kwk, kb = jax.random.split(key, 3)

    # Module shapes: Conv2d(3, 3, 3, bias=True); input x1 = (1, 3, 32, 32).
    N, Cin, H, W = 1, 3, 32, 32
    Cout, KH, KW = 3, 3, 3

    x1 = jax.random.normal(kx, (N, Cin, H, W), dtype=jnp.float32)

    # Deterministic params mimicking PyTorch's default uniform(-1/sqrt(fan_in), ...).
    fan_in = Cin * KH * KW
    bound = 1.0 / np.sqrt(fan_in)
    w = jax.random.uniform(kwk, (Cout, Cin, KH, KW), jnp.float32, -bound, bound)
    b = jax.random.uniform(kb, (Cout,), jnp.float32, -bound, bound)

    out = jax.block_until_ready(conv2d_relu_pallas(x1, w, b))
    ref = jax.block_until_ready(reference_conv_relu(x1, w, b))

    assert out.shape == (N, Cout, H - KH + 1, W - KW + 1)
    assert np.allclose(np.asarray(out), np.asarray(ref), atol=1e-5, rtol=1e-5)

    print("KERNEL_OK")
</pallas_src>

<mosaic_0001>
module attributes {stable_mosaic.version = 11 : i64} {
  func.func @conv_relu_kernel(%arg0: memref<1x3x32x32xf32, #tpu.memory_space<vmem>>, %arg1: memref<81xf32, #tpu.memory_space<smem>>, %arg2: memref<3xf32, #tpu.memory_space<smem>>, %arg3: memref<1x3x30x30xf32, #tpu.memory_space<vmem>>) attributes {dimension_semantics = [], scalar_prefetch = 0 : i64, scratch_operands = 0 : i64, tpu.core_type = #tpu.core_type<tc>} {
    %c0 = arith.constant 0 : index
    %0 = memref.load %arg2[%c0] : memref<3xf32, #tpu.memory_space<smem>>
    %1 = vector.broadcast %0 : f32 to vector<30x30xf32>
    %c1 = arith.constant 1 : index
    %2 = memref.load %arg2[%c1] : memref<3xf32, #tpu.memory_space<smem>>
    %3 = vector.broadcast %2 : f32 to vector<30x30xf32>
    %c2 = arith.constant 2 : index
    %4 = memref.load %arg2[%c2] : memref<3xf32, #tpu.memory_space<smem>>
    %5 = vector.broadcast %4 : f32 to vector<30x30xf32>
    %c0_0 = arith.constant 0 : index
    %c0_1 = arith.constant 0 : index
    %c0_2 = arith.constant 0 : index
    %c0_3 = arith.constant 0 : index
    %6 = vector.load %arg0[%c0_0, %c0_1, %c0_2, %c0_3] : memref<1x3x32x32xf32, #tpu.memory_space<vmem>>, vector<1x1x30x30xf32>
    %7 = vector.shape_cast %6 : vector<1x1x30x30xf32> to vector<30x30xf32>
    %c0_4 = arith.constant 0 : index
    %8 = memref.load %arg1[%c0_4] : memref<81xf32, #tpu.memory_space<smem>>
    %9 = vector.broadcast %8 : f32 to vector<30x30xf32>
    %10 = arith.mulf %9, %7 : vector<30x30xf32>
    %11 = arith.addf %1, %10 : vector<30x30xf32>
    %c27 = arith.constant 27 : index
    %12 = memref.load %arg1[%c27] : memref<81xf32, #tpu.memory_space<smem>>
    %13 = vector.broadcast %12 : f32 to vector<30x30xf32>
    %14 = arith.mulf %13, %7 : vector<30x30xf32>
    %15 = arith.addf %3, %14 : vector<30x30xf32>
    %c54 = arith.constant 54 : index
    %16 = memref.load %arg1[%c54] : memref<81xf32, #tpu.memory_space<smem>>
    %17 = vector.broadcast %16 : f32 to vector<30x30xf32>
    %18 = arith.mulf %17, %7 : vector<30x30xf32>
    %19 = arith.addf %5, %18 : vector<30x30xf32>
    %c0_5 = arith.constant 0 : index
    %c0_6 = arith.constant 0 : index
    %c0_7 = arith.constant 0 : index
    %c1_8 = arith.constant 1 : index
    %20 = vector.load %arg0[%c0_5, %c0_6, %c0_7, %c1_8] : memref<1x3x32x32xf32, #tpu.memory_space<vmem>>, vector<1x1x30x30xf32>
    %21 = vector.shape_cast %20 : vector<1x1x30x30xf32> to vector<30x30xf32>
    %c1_9 = arith.constant 1 : index
    %22 = memref.load %arg1[%c1_9] : memref<81xf32, #tpu.memory_space<smem>>
    %23 = vector.broadcast %22 : f32 to vector<30x30xf32>
    %24 = arith.mulf %23, %21 : vector<30x30xf32>
    %25 = arith.addf %11, %24 : vector<30x30xf32>
    %c28 = arith.constant 28 : index
    %26 = memref.load %arg1[%c28] : memref<81xf32, #tpu.memory_space<smem>>
    %27 = vector.broadcast %26 : f32 to vector<30x30xf32>
    %28 = arith.mulf %27, %21 : vector<30x30xf32>
    %29 = arith.addf %15, %28 : vector<30x30xf32>
    %c55 = arith.constant 55 : index
    %30 = memref.load %arg1[%c55] : memref<81xf32, #tpu.memory_space<smem>>
    %31 = vector.broadcast %30 : f32 to vector<30x30xf32>
    %32 = arith.mulf %31, %21 : vector<30x30xf32>
    %33 = arith.addf %19, %32 : vector<30x30xf32>
    %c0_10 = arith.constant 0 : index
    %c0_11 = arith.constant 0 : index
    %c0_12 = arith.constant 0 : index
    %c2_13 = arith.constant 2 : index
    %34 = vector.load %arg0[%c0_10, %c0_11, %c0_12, %c2_13] : memref<1x3x32x32xf32, #tpu.memory_space<vmem>>, vector<1x1x30x30xf32>
    %35 = vector.shape_cast %34 : vector<1x1x30x30xf32> to vector<30x30xf32>
    %c2_14 = arith.constant 2 : index
    %36 = memref.load %arg1[%c2_14] : memref<81xf32, #tpu.memory_space<smem>>
    %37 = vector.broadcast %36 : f32 to vector<30x30xf32>
    %38 = arith.mulf %37, %35 : vector<30x30xf32>
    %39 = arith.addf %25, %38 : vector<30x30xf32>
    %c29 = arith.constant 29 : index
    %40 = memref.load %arg1[%c29] : memref<81xf32, #tpu.memory_space<smem>>
    %41 = vector.broadcast %40 : f32 to vector<30x30xf32>
    %42 = arith.mulf %41, %35 : vector<30x30xf32>
    %43 = arith.addf %29, %42 : vector<30x30xf32>
    %c56 = arith.constant 56 : index
    %44 = memref.load %arg1[%c56] : memref<81xf32, #tpu.memory_space<smem>>
    %45 = vector.broadcast %44 : f32 to vector<30x30xf32>
    %46 = arith.mulf %45, %35 : vector<30x30xf32>
    %47 = arith.addf %33, %46 : vector<30x30xf32>
    %c0_15 = arith.constant 0 : index
    %c0_16 = arith.constant 0 : index
    %c1_17 = arith.constant 1 : index
    %c0_18 = arith.constant 0 : index
    %48 = vector.load %arg0[%c0_15, %c0_16, %c1_17, %c0_18] : memref<1x3x32x32xf32, #tpu.memory_space<vmem>>, vector<1x1x30x30xf32>
    %49 = vector.shape_cast %48 : vector<1x1x30x30xf32> to vector<30x30xf32>
    %c3 = arith.constant 3 : index
    %50 = memref.load %arg1[%c3] : memref<81xf32, #tpu.memory_space<smem>>
    %51 = vector.broadcast %50 : f32 to vector<30x30xf32>
    %52 = arith.mulf %51, %49 : vector<30x30xf32>
    %53 = arith.addf %39, %52 : vector<30x30xf32>
    %c30 = arith.constant 30 : index
    %54 = memref.load %arg1[%c30] : memref<81xf32, #tpu.memory_space<smem>>
    %55 = vector.broadcast %54 : f32 to vector<30x30xf32>
    %56 = arith.mulf %55, %49 : vector<30x30xf32>
    %57 = arith.addf %43, %56 : vector<30x30xf32>
    %c57 = arith.constant 57 : index
    %58 = memref.load %arg1[%c57] : memref<81xf32, #tpu.memory_space<smem>>
    %59 = vector.broadcast %58 : f32 to vector<30x30xf32>
    %60 = arith.mulf %59, %49 : vector<30x30xf32>
    %61 = arith.addf %47, %60 : vector<30x30xf32>
    %c0_19 = arith.constant 0 : index
    %c0_20 = arith.constant 0 : index
    %c1_21 = arith.constant 1 : index
    %c1_22 = arith.constant 1 : index
    %62 = vector.load %arg0[%c0_19, %c0_20, %c1_21, %c1_22] : memref<1x3x32x32xf32, #tpu.memory_space<vmem>>, vector<1x1x30x30xf32>
    %63 = vector.shape_cast %62 : vector<1x1x30x30xf32> to vector<30x30xf32>
    %c4 = arith.constant 4 : index
    %64 = memref.load %arg1[%c4] : memref<81xf32, #tpu.memory_space<smem>>
    %65 = vector.broadcast %64 : f32 to vector<30x30xf32>
    %66 = arith.mulf %65, %63 : vector<30x30xf32>
    %67 = arith.addf %53, %66 : vector<30x30xf32>
    %c31 = arith.constant 31 : index
    %68 = memref.load %arg1[%c31] : memref<81xf32, #tpu.memory_space<smem>>
    %69 = vector.broadcast %68 : f32 to vector<30x30xf32>
    %70 = arith.mulf %69, %63 : vector<30x30xf32>
    %71 = arith.addf %57, %70 : vector<30x30xf32>
    %c58 = arith.constant 58 : index
    %72 = memref.load %arg1[%c58] : memref<81xf32, #tpu.memory_space<smem>>
    %73 = vector.broadcast %72 : f32 to vector<30x30xf32>
    %74 = arith.mulf %73, %63 : vector<30x30xf32>
    %75 = arith.addf %61, %74 : vector<30x30xf32>
    %c0_23 = arith.constant 0 : index
    %c0_24 = arith.constant 0 : index
    %c1_25 = arith.constant 1 : index
    %c2_26 = arith.constant 2 : index
    %76 = vector.load %arg0[%c0_23, %c0_24, %c1_25, %c2_26] : memref<1x3x32x32xf32, #tpu.memory_space<vmem>>, vector<1x1x30x30xf32>
    %77 = vector.shape_cast %76 : vector<1x1x30x30xf32> to vector<30x30xf32>
    %c5 = arith.constant 5 : index
    %78 = memref.load %arg1[%c5] : memref<81xf32, #tpu.memory_space<smem>>
    %79 = vector.broadcast %78 : f32 to vector<30x30xf32>
    %80 = arith.mulf %79, %77 : vector<30x30xf32>
    %81 = arith.addf %67, %80 : vector<30x30xf32>
    %c32 = arith.constant 32 : index
    %82 = memref.load %arg1[%c32] : memref<81xf32, #tpu.memory_space<smem>>
    %83 = vector.broadcast %82 : f32 to vector<30x30xf32>
    %84 = arith.mulf %83, %77 : vector<30x30xf32>
    %85 = arith.addf %71, %84 : vector<30x30xf32>
    %c59 = arith.constant 59 : index
    %86 = memref.load %arg1[%c59] : memref<81xf32, #tpu.memory_space<smem>>
    %87 = vector.broadcast %86 : f32 to vector<30x30xf32>
    %88 = arith.mulf %87, %77 : vector<30x30xf32>
    %89 = arith.addf %75, %88 : vector<30x30xf32>
    %c0_27 = arith.constant 0 : index
    %c0_28 = arith.constant 0 : index
    %c2_29 = arith.constant 2 : index
    %c0_30 = arith.constant 0 : index
    %90 = vector.load %arg0[%c0_27, %c0_28, %c2_29, %c0_30] : memref<1x3x32x32xf32, #tpu.memory_space<vmem>>, vector<1x1x30x30xf32>
    %91 = vector.shape_cast %90 : vector<1x1x30x30xf32> to vector<30x30xf32>
    %c6 = arith.constant 6 : index
    %92 = memref.load %arg1[%c6] : memref<81xf32, #tpu.memory_space<smem>>
    %93 = vector.broadcast %92 : f32 to vector<30x30xf32>
    %94 = arith.mulf %93, %91 : vector<30x30xf32>
    %95 = arith.addf %81, %94 : vector<30x30xf32>
    %c33 = arith.constant 33 : index
    %96 = memref.load %arg1[%c33] : memref<81xf32, #tpu.memory_space<smem>>
    %97 = vector.broadcast %96 : f32 to vector<30x30xf32>
    %98 = arith.mulf %97, %91 : vector<30x30xf32>
    %99 = arith.addf %85, %98 : vector<30x30xf32>
    %c60 = arith.constant 60 : index
    %100 = memref.load %arg1[%c60] : memref<81xf32, #tpu.memory_space<smem>>
    %101 = vector.broadcast %100 : f32 to vector<30x30xf32>
    %102 = arith.mulf %101, %91 : vector<30x30xf32>
    %103 = arith.addf %89, %102 : vector<30x30xf32>
    %c0_31 = arith.constant 0 : index
    %c0_32 = arith.constant 0 : index
    %c2_33 = arith.constant 2 : index
    %c1_34 = arith.constant 1 : index
    %104 = vector.load %arg0[%c0_31, %c0_32, %c2_33, %c1_34] : memref<1x3x32x32xf32, #tpu.memory_space<vmem>>, vector<1x1x30x30xf32>
    %105 = vector.shape_cast %104 : vector<1x1x30x30xf32> to vector<30x30xf32>
    %c7 = arith.constant 7 : index
    %106 = memref.load %arg1[%c7] : memref<81xf32, #tpu.memory_space<smem>>
    %107 = vector.broadcast %106 : f32 to vector<30x30xf32>
    %108 = arith.mulf %107, %105 : vector<30x30xf32>
    %109 = arith.addf %95, %108 : vector<30x30xf32>
    %c34 = arith.constant 34 : index
    %110 = memref.load %arg1[%c34] : memref<81xf32, #tpu.memory_space<smem>>
    %111 = vector.broadcast %110 : f32 to vector<30x30xf32>
    %112 = arith.mulf %111, %105 : vector<30x30xf32>
    %113 = arith.addf %99, %112 : vector<30x30xf32>
    %c61 = arith.constant 61 : index
    %114 = memref.load %arg1[%c61] : memref<81xf32, #tpu.memory_space<smem>>
    %115 = vector.broadcast %114 : f32 to vector<30x30xf32>
    %116 = arith.mulf %115, %105 : vector<30x30xf32>
    %117 = arith.addf %103, %116 : vector<30x30xf32>
    %c0_35 = arith.constant 0 : index
    %c0_36 = arith.constant 0 : index
    %c2_37 = arith.constant 2 : index
    %c2_38 = arith.constant 2 : index
    %118 = vector.load %arg0[%c0_35, %c0_36, %c2_37, %c2_38] : memref<1x3x32x32xf32, #tpu.memory_space<vmem>>, vector<1x1x30x30xf32>
    %119 = vector.shape_cast %118 : vector<1x1x30x30xf32> to vector<30x30xf32>
    %c8 = arith.constant 8 : index
    %120 = memref.load %arg1[%c8] : memref<81xf32, #tpu.memory_space<smem>>
    %121 = vector.broadcast %120 : f32 to vector<30x30xf32>
    %122 = arith.mulf %121, %119 : vector<30x30xf32>
    %123 = arith.addf %109, %122 : vector<30x30xf32>
    %c35 = arith.constant 35 : index
    %124 = memref.load %arg1[%c35] : memref<81xf32, #tpu.memory_space<smem>>
    %125 = vector.broadcast %124 : f32 to vector<30x30xf32>
    %126 = arith.mulf %125, %119 : vector<30x30xf32>
    %127 = arith.addf %113, %126 : vector<30x30xf32>
    %c62 = arith.constant 62 : index
    %128 = memref.load %arg1[%c62] : memref<81xf32, #tpu.memory_space<smem>>
    %129 = vector.broadcast %128 : f32 to vector<30x30xf32>
    %130 = arith.mulf %129, %119 : vector<30x30xf32>
    %131 = arith.addf %117, %130 : vector<30x30xf32>
    %c0_39 = arith.constant 0 : index
    %c1_40 = arith.constant 1 : index
    %c0_41 = arith.constant 0 : index
    %c0_42 = arith.constant 0 : index
    %132 = vector.load %arg0[%c0_39, %c1_40, %c0_41, %c0_42] : memref<1x3x32x32xf32, #tpu.memory_space<vmem>>, vector<1x1x30x30xf32>
    %133 = vector.shape_cast %132 : vector<1x1x30x30xf32> to vector<30x30xf32>
    %c9 = arith.constant 9 : index
    %134 = memref.load %arg1[%c9] : memref<81xf32, #tpu.memory_space<smem>>
    %135 = vector.broadcast %134 : f32 to vector<30x30xf32>
    %136 = arith.mulf %135, %133 : vector<30x30xf32>
    %137 = arith.addf %123, %136 : vector<30x30xf32>
    %c36 = arith.constant 36 : index
    %138 = memref.load %arg1[%c36] : memref<81xf32, #tpu.memory_space<smem>>
    %139 = vector.broadcast %138 : f32 to vector<30x30xf32>
    %140 = arith.mulf %139, %133 : vector<30x30xf32>
    %141 = arith.addf %127, %140 : vector<30x30xf32>
    %c63 = arith.constant 63 : index
    %142 = memref.load %arg1[%c63] : memref<81xf32, #tpu.memory_space<smem>>
    %143 = vector.broadcast %142 : f32 to vector<30x30xf32>
    %144 = arith.mulf %143, %133 : vector<30x30xf32>
    %145 = arith.addf %131, %144 : vector<30x30xf32>
    %c0_43 = arith.constant 0 : index
    %c1_44 = arith.constant 1 : index
    %c0_45 = arith.constant 0 : index
    %c1_46 = arith.constant 1 : index
    %146 = vector.load %arg0[%c0_43, %c1_44, %c0_45, %c1_46] : memref<1x3x32x32xf32, #tpu.memory_space<vmem>>, vector<1x1x30x30xf32>
    %147 = vector.shape_cast %146 : vector<1x1x30x30xf32> to vector<30x30xf32>
    %c10 = arith.constant 10 : index
    %148 = memref.load %arg1[%c10] : memref<81xf32, #tpu.memory_space<smem>>
    %149 = vector.broadcast %148 : f32 to vector<30x30xf32>
    %150 = arith.mulf %149, %147 : vector<30x30xf32>
    %151 = arith.addf %137, %150 : vector<30x30xf32>
    %c37 = arith.constant 37 : index
    %152 = memref.load %arg1[%c37] : memref<81xf32, #tpu.memory_space<smem>>
    %153 = vector.broadcast %152 : f32 to vector<30x30xf32>
    %154 = arith.mulf %153, %147 : vector<30x30xf32>
    %155 = arith.addf %141, %154 : vector<30x30xf32>
    %c64 = arith.constant 64 : index
    %156 = memref.load %arg1[%c64] : memref<81xf32, #tpu.memory_space<smem>>
    %157 = vector.broadcast %156 : f32 to vector<30x30xf32>
    %158 = arith.mulf %157, %147 : vector<30x30xf32>
    %159 = arith.addf %145, %158 : vector<30x30xf32>
    %c0_47 = arith.constant 0 : index
    %c1_48 = arith.constant 1 : index
    %c0_49 = arith.constant 0 : index
    %c2_50 = arith.constant 2 : index
    %160 = vector.load %arg0[%c0_47, %c1_48, %c0_49, %c2_50] : memref<1x3x32x32xf32, #tpu.memory_space<vmem>>, vector<1x1x30x30xf32>
    %161 = vector.shape_cast %160 : vector<1x1x30x30xf32> to vector<30x30xf32>
    %c11 = arith.constant 11 : index
    %162 = memref.load %arg1[%c11] : memref<81xf32, #tpu.memory_space<smem>>
    %163 = vector.broadcast %162 : f32 to vector<30x30xf32>
    %164 = arith.mulf %163, %161 : vector<30x30xf32>
    %165 = arith.addf %151, %164 : vector<30x30xf32>
    %c38 = arith.constant 38 : index
    %166 = memref.load %arg1[%c38] : memref<81xf32, #tpu.memory_space<smem>>
    %167 = vector.broadcast %166 : f32 to vector<30x30xf32>
    %168 = arith.mulf %167, %161 : vector<30x30xf32>
    %169 = arith.addf %155, %168 : vector<30x30xf32>
    %c65 = arith.constant 65 : index
    %170 = memref.load %arg1[%c65] : memref<81xf32, #tpu.memory_space<smem>>
    %171 = vector.broadcast %170 : f32 to vector<30x30xf32>
    %172 = arith.mulf %171, %161 : vector<30x30xf32>
    %173 = arith.addf %159, %172 : vector<30x30xf32>
    %c0_51 = arith.constant 0 : index
    %c1_52 = arith.constant 1 : index
    %c1_53 = arith.constant 1 : index
    %c0_54 = arith.constant 0 : index
    %174 = vector.load %arg0[%c0_51, %c1_52, %c1_53, %c0_54] : memref<1x3x32x32xf32, #tpu.memory_space<vmem>>, vector<1x1x30x30xf32>
    %175 = vector.shape_cast %174 : vector<1x1x30x30xf32> to vector<30x30xf32>
    %c12 = arith.constant 12 : index
    %176 = memref.load %arg1[%c12] : memref<81xf32, #tpu.memory_space<smem>>
    %177 = vector.broadcast %176 : f32 to vector<30x30xf32>
    %178 = arith.mulf %177, %175 : vector<30x30xf32>
    %179 = arith.addf %165, %178 : vector<30x30xf32>
    %c39 = arith.constant 39 : index
    %180 = memref.load %arg1[%c39] : memref<81xf32, #tpu.memory_space<smem>>
    %181 = vector.broadcast %180 : f32 to vector<30x30xf32>
    %182 = arith.mulf %181, %175 : vector<30x30xf32>
    %183 = arith.addf %169, %182 : vector<30x30xf32>
    %c66 = arith.constant 66 : index
    %184 = memref.load %arg1[%c66] : memref<81xf32, #tpu.memory_space<smem>>
    %185 = vector.broadcast %184 : f32 to vector<30x30xf32>
    %186 = arith.mulf %185, %175 : vector<30x30xf32>
    %187 = arith.addf %173, %186 : vector<30x30xf32>
    %c0_55 = arith.constant 0 : index
    %c1_56 = arith.constant 1 : index
    %c1_57 = arith.constant 1 : index
    %c1_58 = arith.constant 1 : index
    %188 = vector.load %arg0[%c0_55, %c1_56, %c1_57, %c1_58] : memref<1x3x32x32xf32, #tpu.memory_space<vmem>>, vector<1x1x30x30xf32>
    %189 = vector.shape_cast %188 : vector<1x1x30x30xf32> to vector<30x30xf32>
    %c13 = arith.constant 13 : index
    %190 = memref.load %arg1[%c13] : memref<81xf32, #tpu.memory_space<smem>>
    %191 = vector.broadcast %190 : f32 to vector<30x30xf32>
    %192 = arith.mulf %191, %189 : vector<30x30xf32>
    %193 = arith.addf %179, %192 : vector<30x30xf32>
    %c40 = arith.constant 40 : index
    %194 = memref.load %arg1[%c40] : memref<81xf32, #tpu.memory_space<smem>>
    %195 = vector.broadcast %194 : f32 to vector<30x30xf32>
    %196 = arith.mulf %195, %189 : vector<30x30xf32>
    %197 = arith.addf %183, %196 : vector<30x30xf32>
    %c67 = arith.constant 67 : index
    %198 = memref.load %arg1[%c67] : memref<81xf32, #tpu.memory_space<smem>>
    %199 = vector.broadcast %198 : f32 to vector<30x30xf32>
    %200 = arith.mulf %199, %189 : vector<30x30xf32>
    %201 = arith.addf %187, %200 : vector<30x30xf32>
    %c0_59 = arith.constant 0 : index
    %c1_60 = arith.constant 1 : index
    %c1_61 = arith.constant 1 : index
    %c2_62 = arith.constant 2 : index
    %202 = vector.load %arg0[%c0_59, %c1_60, %c1_61, %c2_62] : memref<1x3x32x32xf32, #tpu.memory_space<vmem>>, vector<1x1x30x30xf32>
    %203 = vector.shape_cast %202 : vector<1x1x30x30xf32> to vector<30x30xf32>
    %c14 = arith.constant 14 : index
    %204 = memref.load %arg1[%c14] : memref<81xf32, #tpu.memory_space<smem>>
    %205 = vector.broadcast %204 : f32 to vector<30x30xf32>
    %206 = arith.mulf %205, %203 : vector<30x30xf32>
    %207 = arith.addf %193, %206 : vector<30x30xf32>
    %c41 = arith.constant 41 : index
    %208 = memref.load %arg1[%c41] : memref<81xf32, #tpu.memory_space<smem>>
    %209 = vector.broadcast %208 : f32 to vector<30x30xf32>
    %210 = arith.mulf %209, %203 : vector<30x30xf32>
    %211 = arith.addf %197, %210 : vector<30x30xf32>
    %c68 = arith.constant 68 : index
    %212 = memref.load %arg1[%c68] : memref<81xf32, #tpu.memory_space<smem>>
    %213 = vector.broadcast %212 : f32 to vector<30x30xf32>
    %214 = arith.mulf %213, %203 : vector<30x30xf32>
    %215 = arith.addf %201, %214 : vector<30x30xf32>
    %c0_63 = arith.constant 0 : index
    %c1_64 = arith.constant 1 : index
    %c2_65 = arith.constant 2 : index
    %c0_66 = arith.constant 0 : index
    %216 = vector.load %arg0[%c0_63, %c1_64, %c2_65, %c0_66] : memref<1x3x32x32xf32, #tpu.memory_space<vmem>>, vector<1x1x30x30xf32>
    %217 = vector.shape_cast %216 : vector<1x1x30x30xf32> to vector<30x30xf32>
    %c15 = arith.constant 15 : index
    %218 = memref.load %arg1[%c15] : memref<81xf32, #tpu.memory_space<smem>>
    %219 = vector.broadcast %218 : f32 to vector<30x30xf32>
    %220 = arith.mulf %219, %217 : vector<30x30xf32>
    %221 = arith.addf %207, %220 : vector<30x30xf32>
    %c42 = arith.constant 42 : index
    %222 = memref.load %arg1[%c42] : memref<81xf32, #tpu.memory_space<smem>>
    %223 = vector.broadcast %222 : f32 to vector<30x30xf32>
    %224 = arith.mulf %223, %217 : vector<30x30xf32>
    %225 = arith.addf %211, %224 : vector<30x30xf32>
    %c69 = arith.constant 69 : index
    %226 = memref.load %arg1[%c69] : memref<81xf32, #tpu.memory_space<smem>>
    %227 = vector.broadcast %226 : f32 to vector<30x30xf32>
    %228 = arith.mulf %227, %217 : vector<30x30xf32>
    %229 = arith.addf %215, %228 : vector<30x30xf32>
    %c0_67 = arith.constant 0 : index
    %c1_68 = arith.constant 1 : index
    %c2_69 = arith.constant 2 : index
    %c1_70 = arith.constant 1 : index
    %230 = vector.load %arg0[%c0_67, %c1_68, %c2_69, %c1_70] : memref<1x3x32x32xf32, #tpu.memory_space<vmem>>, vector<1x1x30x30xf32>
    %231 = vector.shape_cast %230 : vector<1x1x30x30xf32> to vector<30x30xf32>
    %c16 = arith.constant 16 : index
    %232 = memref.load %arg1[%c16] : memref<81xf32, #tpu.memory_space<smem>>
    %233 = vector.broadcast %232 : f32 to vector<30x30xf32>
    %234 = arith.mulf %233, %231 : vector<30x30xf32>
    %235 = arith.addf %221, %234 : vector<30x30xf32>
    %c43 = arith.constant 43 : index
    %236 = memref.load %arg1[%c43] : memref<81xf32, #tpu.memory_space<smem>>
    %237 = vector.broadcast %236 : f32 to vector<30x30xf32>
    %238 = arith.mulf %237, %231 : vector<30x30xf32>
    %239 = arith.addf %225, %238 : vector<30x30xf32>
    %c70 = arith.constant 70 : index
    %240 = memref.load %arg1[%c70] : memref<81xf32, #tpu.memory_space<smem>>
    %241 = vector.broadcast %240 : f32 to vector<30x30xf32>
    %242 = arith.mulf %241, %231 : vector<30x30xf32>
    %243 = arith.addf %229, %242 : vector<30x30xf32>
    %c0_71 = arith.constant 0 : index
    %c1_72 = arith.constant 1 : index
    %c2_73 = arith.constant 2 : index
    %c2_74 = arith.constant 2 : index
    %244 = vector.load %arg0[%c0_71, %c1_72, %c2_73, %c2_74] : memref<1x3x32x32xf32, #tpu.memory_space<vmem>>, vector<1x1x30x30xf32>
    %245 = vector.shape_cast %244 : vector<1x1x30x30xf32> to vector<30x30xf32>
    %c17 = arith.constant 17 : index
    %246 = memref.load %arg1[%c17] : memref<81xf32, #tpu.memory_space<smem>>
    %247 = vector.broadcast %246 : f32 to vector<30x30xf32>
    %248 = arith.mulf %247, %245 : vector<30x30xf32>
    %249 = arith.addf %235, %248 : vector<30x30xf32>
    %c44 = arith.constant 44 : index
    %250 = memref.load %arg1[%c44] : memref<81xf32, #tpu.memory_space<smem>>
    %251 = vector.broadcast %250 : f32 to vector<30x30xf32>
    %252 = arith.mulf %251, %245 : vector<30x30xf32>
    %253 = arith.addf %239, %252 : vector<30x30xf32>
    %c71 = arith.constant 71 : index
    %254 = memref.load %arg1[%c71] : memref<81xf32, #tpu.memory_space<smem>>
    %255 = vector.broadcast %254 : f32 to vector<30x30xf32>
    %256 = arith.mulf %255, %245 : vector<30x30xf32>
    %257 = arith.addf %243, %256 : vector<30x30xf32>
    %c0_75 = arith.constant 0 : index
    %c2_76 = arith.constant 2 : index
    %c0_77 = arith.constant 0 : index
    %c0_78 = arith.constant 0 : index
    %258 = vector.load %arg0[%c0_75, %c2_76, %c0_77, %c0_78] : memref<1x3x32x32xf32, #tpu.memory_space<vmem>>, vector<1x1x30x30xf32>
    %259 = vector.shape_cast %258 : vector<1x1x30x30xf32> to vector<30x30xf32>
    %c18 = arith.constant 18 : index
    %260 = memref.load %arg1[%c18] : memref<81xf32, #tpu.memory_space<smem>>
    %261 = vector.broadcast %260 : f32 to vector<30x30xf32>
    %262 = arith.mulf %261, %259 : vector<30x30xf32>
    %263 = arith.addf %249, %262 : vector<30x30xf32>
    %c45 = arith.constant 45 : index
    %264 = memref.load %arg1[%c45] : memref<81xf32, #tpu.memory_space<smem>>
    %265 = vector.broadcast %264 : f32 to vector<30x30xf32>
    %266 = arith.mulf %265, %259 : vector<30x30xf32>
    %267 = arith.addf %253, %266 : vector<30x30xf32>
    %c72 = arith.constant 72 : index
    %268 = memref.load %arg1[%c72] : memref<81xf32, #tpu.memory_space<smem>>
    %269 = vector.broadcast %268 : f32 to vector<30x30xf32>
    %270 = arith.mulf %269, %259 : vector<30x30xf32>
    %271 = arith.addf %257, %270 : vector<30x30xf32>
    %c0_79 = arith.constant 0 : index
    %c2_80 = arith.constant 2 : index
    %c0_81 = arith.constant 0 : index
    %c1_82 = arith.constant 1 : index
    %272 = vector.load %arg0[%c0_79, %c2_80, %c0_81, %c1_82] : memref<1x3x32x32xf32, #tpu.memory_space<vmem>>, vector<1x1x30x30xf32>
    %273 = vector.shape_cast %272 : vector<1x1x30x30xf32> to vector<30x30xf32>
    %c19 = arith.constant 19 : index
    %274 = memref.load %arg1[%c19] : memref<81xf32, #tpu.memory_space<smem>>
    %275 = vector.broadcast %274 : f32 to vector<30x30xf32>
    %276 = arith.mulf %275, %273 : vector<30x30xf32>
    %277 = arith.addf %263, %276 : vector<30x30xf32>
    %c46 = arith.constant 46 : index
    %278 = memref.load %arg1[%c46] : memref<81xf32, #tpu.memory_space<smem>>
    %279 = vector.broadcast %278 : f32 to vector<30x30xf32>
    %280 = arith.mulf %279, %273 : vector<30x30xf32>
    %281 = arith.addf %267, %280 : vector<30x30xf32>
    %c73 = arith.constant 73 : index
    %282 = memref.load %arg1[%c73] : memref<81xf32, #tpu.memory_space<smem>>
    %283 = vector.broadcast %282 : f32 to vector<30x30xf32>
    %284 = arith.mulf %283, %273 : vector<30x30xf32>
    %285 = arith.addf %271, %284 : vector<30x30xf32>
    %c0_83 = arith.constant 0 : index
    %c2_84 = arith.constant 2 : index
    %c0_85 = arith.constant 0 : index
    %c2_86 = arith.constant 2 : index
    %286 = vector.load %arg0[%c0_83, %c2_84, %c0_85, %c2_86] : memref<1x3x32x32xf32, #tpu.memory_space<vmem>>, vector<1x1x30x30xf32>
    %287 = vector.shape_cast %286 : vector<1x1x30x30xf32> to vector<30x30xf32>
    %c20 = arith.constant 20 : index
    %288 = memref.load %arg1[%c20] : memref<81xf32, #tpu.memory_space<smem>>
    %289 = vector.broadcast %288 : f32 to vector<30x30xf32>
    %290 = arith.mulf %289, %287 : vector<30x30xf32>
    %291 = arith.addf %277, %290 : vector<30x30xf32>
    %c47 = arith.constant 47 : index
    %292 = memref.load %arg1[%c47] : memref<81xf32, #tpu.memory_space<smem>>
    %293 = vector.broadcast %292 : f32 to vector<30x30xf32>
    %294 = arith.mulf %293, %287 : vector<30x30xf32>
    %295 = arith.addf %281, %294 : vector<30x30xf32>
    %c74 = arith.constant 74 : index
    %296 = memref.load %arg1[%c74] : memref<81xf32, #tpu.memory_space<smem>>
    %297 = vector.broadcast %296 : f32 to vector<30x30xf32>
    %298 = arith.mulf %297, %287 : vector<30x30xf32>
    %299 = arith.addf %285, %298 : vector<30x30xf32>
    %c0_87 = arith.constant 0 : index
    %c2_88 = arith.constant 2 : index
    %c1_89 = arith.constant 1 : index
    %c0_90 = arith.constant 0 : index
    %300 = vector.load %arg0[%c0_87, %c2_88, %c1_89, %c0_90] : memref<1x3x32x32xf32, #tpu.memory_space<vmem>>, vector<1x1x30x30xf32>
    %301 = vector.shape_cast %300 : vector<1x1x30x30xf32> to vector<30x30xf32>
    %c21 = arith.constant 21 : index
    %302 = memref.load %arg1[%c21] : memref<81xf32, #tpu.memory_space<smem>>
    %303 = vector.broadcast %302 : f32 to vector<30x30xf32>
    %304 = arith.mulf %303, %301 : vector<30x30xf32>
    %305 = arith.addf %291, %304 : vector<30x30xf32>
    %c48 = arith.constant 48 : index
    %306 = memref.load %arg1[%c48] : memref<81xf32, #tpu.memory_space<smem>>
    %307 = vector.broadcast %306 : f32 to vector<30x30xf32>
    %308 = arith.mulf %307, %301 : vector<30x30xf32>
    %309 = arith.addf %295, %308 : vector<30x30xf32>
    %c75 = arith.constant 75 : index
    %310 = memref.load %arg1[%c75] : memref<81xf32, #tpu.memory_space<smem>>
    %311 = vector.broadcast %310 : f32 to vector<30x30xf32>
    %312 = arith.mulf %311, %301 : vector<30x30xf32>
    %313 = arith.addf %299, %312 : vector<30x30xf32>
    %c0_91 = arith.constant 0 : index
    %c2_92 = arith.constant 2 : index
    %c1_93 = arith.constant 1 : index
    %c1_94 = arith.constant 1 : index
    %314 = vector.load %arg0[%c0_91, %c2_92, %c1_93, %c1_94] : memref<1x3x32x32xf32, #tpu.memory_space<vmem>>, vector<1x1x30x30xf32>
    %315 = vector.shape_cast %314 : vector<1x1x30x30xf32> to vector<30x30xf32>
    %c22 = arith.constant 22 : index
    %316 = memref.load %arg1[%c22] : memref<81xf32, #tpu.memory_space<smem>>
    %317 = vector.broadcast %316 : f32 to vector<30x30xf32>
    %318 = arith.mulf %317, %315 : vector<30x30xf32>
    %319 = arith.addf %305, %318 : vector<30x30xf32>
    %c49 = arith.constant 49 : index
    %320 = memref.load %arg1[%c49] : memref<81xf32, #tpu.memory_space<smem>>
    %321 = vector.broadcast %320 : f32 to vector<30x30xf32>
    %322 = arith.mulf %321, %315 : vector<30x30xf32>
    %323 = arith.addf %309, %322 : vector<30x30xf32>
    %c76 = arith.constant 76 : index
    %324 = memref.load %arg1[%c76] : memref<81xf32, #tpu.memory_space<smem>>
    %325 = vector.broadcast %324 : f32 to vector<30x30xf32>
    %326 = arith.mulf %325, %315 : vector<30x30xf32>
    %327 = arith.addf %313, %326 : vector<30x30xf32>
    %c0_95 = arith.constant 0 : index
    %c2_96 = arith.constant 2 : index
    %c1_97 = arith.constant 1 : index
    %c2_98 = arith.constant 2 : index
    %328 = vector.load %arg0[%c0_95, %c2_96, %c1_97, %c2_98] : memref<1x3x32x32xf32, #tpu.memory_space<vmem>>, vector<1x1x30x30xf32>
    %329 = vector.shape_cast %328 : vector<1x1x30x30xf32> to vector<30x30xf32>
    %c23 = arith.constant 23 : index
    %330 = memref.load %arg1[%c23] : memref<81xf32, #tpu.memory_space<smem>>
    %331 = vector.broadcast %330 : f32 to vector<30x30xf32>
    %332 = arith.mulf %331, %329 : vector<30x30xf32>
    %333 = arith.addf %319, %332 : vector<30x30xf32>
    %c50 = arith.constant 50 : index
    %334 = memref.load %arg1[%c50] : memref<81xf32, #tpu.memory_space<smem>>
    %335 = vector.broadcast %334 : f32 to vector<30x30xf32>
    %336 = arith.mulf %335, %329 : vector<30x30xf32>
    %337 = arith.addf %323, %336 : vector<30x30xf32>
    %c77 = arith.constant 77 : index
    %338 = memref.load %arg1[%c77] : memref<81xf32, #tpu.memory_space<smem>>
    %339 = vector.broadcast %338 : f32 to vector<30x30xf32>
    %340 = arith.mulf %339, %329 : vector<30x30xf32>
    %341 = arith.addf %327, %340 : vector<30x30xf32>
    %c0_99 = arith.constant 0 : index
    %c2_100 = arith.constant 2 : index
    %c2_101 = arith.constant 2 : index
    %c0_102 = arith.constant 0 : index
    %342 = vector.load %arg0[%c0_99, %c2_100, %c2_101, %c0_102] : memref<1x3x32x32xf32, #tpu.memory_space<vmem>>, vector<1x1x30x30xf32>
    %343 = vector.shape_cast %342 : vector<1x1x30x30xf32> to vector<30x30xf32>
    %c24 = arith.constant 24 : index
    %344 = memref.load %arg1[%c24] : memref<81xf32, #tpu.memory_space<smem>>
    %345 = vector.broadcast %344 : f32 to vector<30x30xf32>
    %346 = arith.mulf %345, %343 : vector<30x30xf32>
    %347 = arith.addf %333, %346 : vector<30x30xf32>
    %c51 = arith.constant 51 : index
    %348 = memref.load %arg1[%c51] : memref<81xf32, #tpu.memory_space<smem>>
    %349 = vector.broadcast %348 : f32 to vector<30x30xf32>
    %350 = arith.mulf %349, %343 : vector<30x30xf32>
    %351 = arith.addf %337, %350 : vector<30x30xf32>
    %c78 = arith.constant 78 : index
    %352 = memref.load %arg1[%c78] : memref<81xf32, #tpu.memory_space<smem>>
    %353 = vector.broadcast %352 : f32 to vector<30x30xf32>
    %354 = arith.mulf %353, %343 : vector<30x30xf32>
    %355 = arith.addf %341, %354 : vector<30x30xf32>
    %c0_103 = arith.constant 0 : index
    %c2_104 = arith.constant 2 : index
    %c2_105 = arith.constant 2 : index
    %c1_106 = arith.constant 1 : index
    %356 = vector.load %arg0[%c0_103, %c2_104, %c2_105, %c1_106] : memref<1x3x32x32xf32, #tpu.memory_space<vmem>>, vector<1x1x30x30xf32>
    %357 = vector.shape_cast %356 : vector<1x1x30x30xf32> to vector<30x30xf32>
    %c25 = arith.constant 25 : index
    %358 = memref.load %arg1[%c25] : memref<81xf32, #tpu.memory_space<smem>>
    %359 = vector.broadcast %358 : f32 to vector<30x30xf32>
    %360 = arith.mulf %359, %357 : vector<30x30xf32>
    %361 = arith.addf %347, %360 : vector<30x30xf32>
    %c52 = arith.constant 52 : index
    %362 = memref.load %arg1[%c52] : memref<81xf32, #tpu.memory_space<smem>>
    %363 = vector.broadcast %362 : f32 to vector<30x30xf32>
    %364 = arith.mulf %363, %357 : vector<30x30xf32>
    %365 = arith.addf %351, %364 : vector<30x30xf32>
    %c79 = arith.constant 79 : index
    %366 = memref.load %arg1[%c79] : memref<81xf32, #tpu.memory_space<smem>>
    %367 = vector.broadcast %366 : f32 to vector<30x30xf32>
    %368 = arith.mulf %367, %357 : vector<30x30xf32>
    %369 = arith.addf %355, %368 : vector<30x30xf32>
    %c0_107 = arith.constant 0 : index
    %c2_108 = arith.constant 2 : index
    %c2_109 = arith.constant 2 : index
    %c2_110 = arith.constant 2 : index
    %370 = vector.load %arg0[%c0_107, %c2_108, %c2_109, %c2_110] : memref<1x3x32x32xf32, #tpu.memory_space<vmem>>, vector<1x1x30x30xf32>
    %371 = vector.shape_cast %370 : vector<1x1x30x30xf32> to vector<30x30xf32>
    %c26 = arith.constant 26 : index
    %372 = memref.load %arg1[%c26] : memref<81xf32, #tpu.memory_space<smem>>
    %373 = vector.broadcast %372 : f32 to vector<30x30xf32>
    %374 = arith.mulf %373, %371 : vector<30x30xf32>
    %375 = arith.addf %361, %374 : vector<30x30xf32>
    %c53 = arith.constant 53 : index
    %376 = memref.load %arg1[%c53] : memref<81xf32, #tpu.memory_space<smem>>
    %377 = vector.broadcast %376 : f32 to vector<30x30xf32>
    %378 = arith.mulf %377, %371 : vector<30x30xf32>
    %379 = arith.addf %365, %378 : vector<30x30xf32>
    %c80 = arith.constant 80 : index
    %380 = memref.load %arg1[%c80] : memref<81xf32, #tpu.memory_space<smem>>
    %381 = vector.broadcast %380 : f32 to vector<30x30xf32>
    %382 = arith.mulf %381, %371 : vector<30x30xf32>
    %383 = arith.addf %369, %382 : vector<30x30xf32>
    %384 = vector.shape_cast %375 : vector<30x30xf32> to vector<1x30x30xf32>
    %385 = vector.shape_cast %379 : vector<30x30xf32> to vector<1x30x30xf32>
    %386 = vector.shape_cast %383 : vector<30x30xf32> to vector<1x30x30xf32>
    %387 = tpu.concatenate %384, %385, %386 in 0 : vector<1x30x30xf32>, vector<1x30x30xf32>, vector<1x30x30xf32> -> vector<3x30x30xf32>
    %cst = arith.constant 0.000000e+00 : f32
    %388 = vector.broadcast %cst : f32 to vector<3x30x30xf32>
    %389 = arith.maximumf %387, %388 : vector<3x30x30xf32>
    %c0_111 = arith.constant 0 : index
    %c0_112 = arith.constant 0 : index
    %c0_113 = arith.constant 0 : index
    %c0_114 = arith.constant 0 : index
    %390 = vector.load %arg3[%c0_111, %c0_112, %c0_113, %c0_114] : memref<1x3x30x30xf32, #tpu.memory_space<vmem>>, vector<1x3x30x30xf32>
    %391 = vector.shape_cast %390 : vector<1x3x30x30xf32> to vector<3x30x30xf32>
    %392 = vector.shape_cast %389 : vector<3x30x30xf32> to vector<1x3x30x30xf32>
    tpu.vector_store %arg3[%c0_111, %c0_112, %c0_113, %c0_114], %392 {strides = array<i32>} : memref<1x3x30x30xf32, #tpu.memory_space<vmem>>, vector<1x3x30x30xf32>,
    return
  }
}

</mosaic_0001>

<llo_original>
// kernel: conv2d_relu_pallas.1
$region0: #{conv2d_relu_pallas.1}
  #allocation0 [shape = 'u32[]', space=smem, size = 0x4, offset = 0x4, fixed_abs, tag = 'smem constant byte address 0x4 - core index']
  #allocation1 [shape = 'u32[144,128]{1,0:T(1,128)}', space=vmem, size = 0x12000, scoped, tag = 'internal scratch']
  %s0 = inlined_call_operand.hbm [shape: f32[1,3,32,32], index: 0, kind: input, shape index: {}]
  %s1 = inlined_call_operand.vmem [shape: f32[81], index: 1, kind: input, shape index: {}]
  %s2 = inlined_call_operand.vmem [shape: f32[3], index: 2, kind: input, shape index: {}]
  %s3 = inlined_call_operand.vmem [shape: f32[1,3,30,30], index: 3, kind: output, shape index: {}]
  %s4 = sld [smem:[#allocation0]]
  $region34: #{conv2d_relu_pallas.1} parent=0
    _
  %s6 = ssub.s32 1, %s4
  %s7 = scalar_select 0, %s6, %s4
  $region1: #{conv2d_relu_pallas.1} parent=0
    #allocation2 [shape = 'u8[49152]{0}', space=vmem, size = 0xc000, scoped, tag = 'input window, operand 0, single buffered']
    #allocation3 [shape = 's32[1]{0}', space=sflag, size = 0x4, scoped, tag = 'scoped memory for conv2d_relu_pallas.1']
    #allocation4 [shape = 's32[1]{0}', space=sflag, size = 0x4, scoped, tag = 'scoped memory for conv2d_relu_pallas.1']
    #allocation5 [shape = 'u8[512]{0}', space=smem, size = 0x200, scoped, tag = 'input window, operand 1, single buffered']
    #allocation6 [shape = 'u8[512]{0}', space=smem, size = 0x200, scoped, tag = 'input window, operand 2, single buffered']
    #allocation7 [shape = 's32[1]{0}', space=sflag, size = 0x4, scoped, tag = 'scoped memory for conv2d_relu_pallas.1']
    %8 = vsyncpa [#allocation3], 0
    %9 = vsyncpa [#allocation4], 0
    %10 = vsyncpa [#allocation7], 0
    // Predicated region
    $region2: #{conv2d_relu_pallas.1} parent=1 // pred_check
      _
    $region3: #{conv2d_relu_pallas.1} parent=1 // pred_check_branch
      %12 = sbr.rel (0) target = $region5
    $region4: #{conv2d_relu_pallas.1} parent=1 // pred_region
      %s14 = ssub.s32 1536, 1536
      %15 = vsyncadd [#allocation3], %s14
      %s16 = sshll.u32 [#allocation2], 4
      %s17 = int_to_ptr.vmem [resolvable:$true] %s16
      %22 = dma.hbm_to_vmem [thread:$0]  %s0, 1536, %s17, [#allocation3], 128, 128, 8
    $region5: #{conv2d_relu_pallas.1} parent=1 // pred_fallthru
      _
    // Predicated region
    $region6: #{conv2d_relu_pallas.1} parent=1 // pred_check
      _
    $region7: #{conv2d_relu_pallas.1} parent=1 // pred_check_branch
      %24 = sbr.rel (0) target = $region9
    $region8: #{conv2d_relu_pallas.1} parent=1 // pred_region
      %s26 = ssub.s32 16, 16
      %27 = vsyncadd [#allocation4], %s26
      %s29 = sshll.u32 %s1, 4
      %s30 = int_to_ptr.vmem [resolvable:$true] %s29
      %32 = dma.vmem_to_smem %s30, 16, [#allocation5], [#allocation4]
    $region9: #{conv2d_relu_pallas.1} parent=1 // pred_fallthru
      _
    // Predicated region
    $region10: #{conv2d_relu_pallas.1} parent=1 // pred_check
      _
    $region11: #{conv2d_relu_pallas.1} parent=1 // pred_check_branch
      %34 = sbr.rel (0) target = $region13
    $region12: #{conv2d_relu_pallas.1} parent=1 // pred_region
      %s36 = ssub.s32 16, 16
      %37 = vsyncadd [#allocation7], %s36
      %s39 = sshll.u32 %s2, 4
      %s40 = int_to_ptr.vmem [resolvable:$true] %s39
      %42 = dma.vmem_to_smem %s40, 16, [#allocation6], [#allocation7]
    $region13: #{conv2d_relu_pallas.1} parent=1 // pred_fallthru
      _
    // Predicated region
    $region14: #{conv2d_relu_pallas.1} parent=1 // pred_check
      _
    $region15: #{conv2d_relu_pallas.1} parent=1 // pred_check_branch
      %44 = sbr.rel (0) target = $region17
    $region16: #{conv2d_relu_pallas.1} parent=1 // pred_region
      %45 = dma.done [#allocation3], 1536
    $region17: #{conv2d_relu_pallas.1} parent=1 // pred_fallthru
      _
    // Predicated region
    $region18: #{conv2d_relu_pallas.1} parent=1 // pred_check
      _
    $region19: #{conv2d_relu_pallas.1} parent=1 // pred_check_branch
      %47 = sbr.rel (0) target = $region21
    $region20: #{conv2d_relu_pallas.1} parent=1 // pred_region
      %48 = dma.done [#allocation4], 16
    $region21: #{conv2d_relu_pallas.1} parent=1 // pred_fallthru
      _
    // Predicated region
    $region22: #{conv2d_relu_pallas.1} parent=1 // pred_check
      _
    $region23: #{conv2d_relu_pallas.1} parent=1 // pred_check_branch
      %50 = sbr.rel (0) target = $region25
    $region24: #{conv2d_relu_pallas.1} parent=1 // pred_region
      %51 = dma.done [#allocation7], 16
    $region25: #{conv2d_relu_pallas.1} parent=1 // pred_fallthru
      _
    %52 = sfence
    %s53 = sld [smem:[#allocation6]]
    %v54 = vstv %s53
    %s55 = sld [smem:[#allocation6 + $0x1]]
    %v56 = vstv %s55
    %s57 = sld [smem:[#allocation6 + $0x2]]
    %v58 = vstv %s57
    %v59 = vld [vmem:[#allocation2] sm:$0xff]
    %v60 = vld [vmem:[#allocation2 + $0x8] sm:$0xff]
    %v61 = vld [vmem:[#allocation2 + $0x10] sm:$0xff]
    %v62 = vld [vmem:[#allocation2 + $0x18] sm:$0x3f]
    %s63 = sld [smem:[#allocation5]]
    %v64 = vstv %s63
    %v65 = vmul.f32 %v64, %v59
    %v66 = vmul.f32 %v64, %v60
    %v67 = vmul.f32 %v64, %v61
    %v68 = vmul.f32 %v64, %v62
    %v69 = vadd.f32 %v54, %v65
    %v70 = vadd.f32 %v54, %v66
    %v71 = vadd.f32 %v54, %v67
    %v72 = vadd.f32 %v54, %v68
    %s73 = sld [smem:[#allocation5 + $0x1b]]
    %v74 = vstv %s73
    %v75 = vmul.f32 %v74, %v59
    %v76 = vmul.f32 %v74, %v60
    %v77 = vmul.f32 %v74, %v61
    %v78 = vmul.f32 %v74, %v62
    %v79 = vadd.f32 %v56, %v75
    %v80 = vadd.f32 %v56, %v76
    %v81 = vadd.f32 %v56, %v77
    %v82 = vadd.f32 %v56, %v78
    %s83 = sld [smem:[#allocation5 + $0x36]]
    %v84 = vstv %s83
    %v85 = vmul.f32 %v84, %v59
    %v86 = vmul.f32 %v84, %v60
    %v87 = vmul.f32 %v84, %v61
    %v88 = vmul.f32 %v84, %v62
    %v89 = vadd.f32 %v58, %v85
    %v90 = vadd.f32 %v58, %v86
    %v91 = vadd.f32 %v58, %v87
    %v92 = vadd.f32 %v58, %v88
    %s93 = sld [smem:[#allocation5 + $0x1]]
    %v94 = vstv %s93
    %v95 = vmul.f32 %v94, %v59
    %v96 = vmul.f32 %v94, %v60
    %v97 = vmul.f32 %v94, %v61
    %v98 = vmul.f32 %v94, %v62
    %103 = vrot.lane.b32.xlu0 %v95, 127
    %v104 = vpop.permute.xlu0 %103
    %105 = vrot.lane.b32.xlu0 %v96, 127
    %v106 = vpop.permute.xlu0 %105
    %107 = vrot.lane.b32.xlu0 %v97, 127
    %v108 = vpop.permute.xlu0 %107
    %109 = vrot.lane.b32.xlu0 %v98, 127
    %v110 = vpop.permute.xlu0 %109
    %v115 = vadd.f32 %v69, %v104
    %v116 = vadd.f32 %v70, %v106
    %v117 = vadd.f32 %v71, %v108
    %v118 = vadd.f32 %v72, %v110
    %s119 = sld [smem:[#allocation5 + $0x1c]]
    %v120 = vstv %s119
    %v121 = vmul.f32 %v120, %v59
    %v122 = vmul.f32 %v120, %v60
    %v123 = vmul.f32 %v120, %v61
    %v124 = vmul.f32 %v120, %v62
    %129 = vrot.lane.b32.xlu0 %v121, 127
    %v130 = vpop.permute.xlu0 %129
    %131 = vrot.lane.b32.xlu0 %v122, 127
    %v132 = vpop.permute.xlu0 %131
    %133 = vrot.lane.b32.xlu0 %v123, 127
    %v134 = vpop.permute.xlu0 %133
    %135 = vrot.lane.b32.xlu0 %v124, 127
    %v136 = vpop.permute.xlu0 %135
    %v141 = vadd.f32 %v79, %v130
    %v142 = vadd.f32 %v80, %v132
    %v143 = vadd.f32 %v81, %v134
    %v144 = vadd.f32 %v82, %v136
    %s145 = sld [smem:[#allocation5 + $0x37]]
    %v146 = vstv %s145
    %v147 = vmul.f32 %v146, %v59
    %v148 = vmul.f32 %v146, %v60
    %v149 = vmul.f32 %v146, %v61
    %v150 = vmul.f32 %v146, %v62
    %155 = vrot.lane.b32.xlu0 %v147, 127
    %v156 = vpop.permute.xlu0 %155
    %157 = vrot.lane.b32.xlu0 %v148, 127
    %v158 = vpop.permute.xlu0 %157
    %159 = vrot.lane.b32.xlu0 %v149, 127
    %v160 = vpop.permute.xlu0 %159
    %161 = vrot.lane.b32.xlu0 %v150, 127
    %v162 = vpop.permute.xlu0 %161
    %v167 = vadd.f32 %v89, %v156
    %v168 = vadd.f32 %v90, %v158
    %v169 = vadd.f32 %v91, %v160
    %v170 = vadd.f32 %v92, %v162
    %s171 = sld [smem:[#allocation5 + $0x2]]
    %v172 = vstv %s171
    %v173 = vmul.f32 %v172, %v59
    %v174 = vmul.f32 %v172, %v60
    %v175 = vmul.f32 %v172, %v61
    %v176 = vmul.f32 %v172, %v62
    %181 = vrot.lane.b32.xlu0 %v173, 126
    %v182 = vpop.permute.xlu0 %181
    %183 = vrot.lane.b32.xlu0 %v174, 126
    %v184 = vpop.permute.xlu0 %183
    %185 = vrot.lane.b32.xlu0 %v175, 126
    %v186 = vpop.permute.xlu0 %185
    %187 = vrot.lane.b32.xlu0 %v176, 126
    %v188 = vpop.permute.xlu0 %187
    %v193 = vadd.f32 %v115, %v182
    %v194 = vadd.f32 %v116, %v184
    %v195 = vadd.f32 %v117, %v186
    %v196 = vadd.f32 %v118, %v188
    %s197 = sld [smem:[#allocation5 + $0x1d]]
    %v198 = vstv %s197
    %v199 = vmul.f32 %v198, %v59
    %v200 = vmul.f32 %v198, %v60
    %v201 = vmul.f32 %v198, %v61
    %v202 = vmul.f32 %v198, %v62
    %207 = vrot.lane.b32.xlu0 %v199, 126
    %v208 = vpop.permute.xlu0 %207
    %209 = vrot.lane.b32.xlu0 %v200, 126
    %v210 = vpop.permute.xlu0 %209
    %211 = vrot.lane.b32.xlu0 %v201, 126
    %v212 = vpop.permute.xlu0 %211
    %213 = vrot.lane.b32.xlu0 %v202, 126
    %v214 = vpop.permute.xlu0 %213
    %v219 = vadd.f32 %v141, %v208
    %v220 = vadd.f32 %v142, %v210
    %v221 = vadd.f32 %v143, %v212
    %v222 = vadd.f32 %v144, %v214
    %s223 = sld [smem:[#allocation5 + $0x38]]
    %v224 = vstv %s223
    %v225 = vmul.f32 %v224, %v59
    %v226 = vmul.f32 %v224, %v60
    %v227 = vmul.f32 %v224, %v61
    %v228 = vmul.f32 %v224, %v62
    %233 = vrot.lane.b32.xlu0 %v225, 126
    %v234 = vpop.permute.xlu0 %233
    %235 = vrot.lane.b32.xlu0 %v226, 126
    %v236 = vpop.permute.xlu0 %235
    %237 = vrot.lane.b32.xlu0 %v227, 126
    %v238 = vpop.permute.xlu0 %237
    %239 = vrot.lane.b32.xlu0 %v228, 126
    %v240 = vpop.permute.xlu0 %239
    %v245 = vadd.f32 %v167, %v234
    %v246 = vadd.f32 %v168, %v236
    %v247 = vadd.f32 %v169, %v238
    %v248 = vadd.f32 %v170, %v240
    %v249 = vld [vmem:[#allocation2 + $0x1] sm:$0xff]
    %v250 = vld [vmem:[#allocation2 + $0x9] sm:$0xff]
    %v251 = vld [vmem:[#allocation2 + $0x11] sm:$0xff]
    %v252 = vld [vmem:[#allocation2 + $0x19] sm:$0x3f]
    %s253 = sld [smem:[#allocation5 + $0x3]]
    %v254 = vstv %s253
    %v255 = vmul.f32 %v254, %v249
    %v256 = vmul.f32 %v254, %v250
    %v257 = vmul.f32 %v254, %v251
    %v258 = vmul.f32 %v254, %v252
    %v259 = vadd.f32 %v193, %v255
    %v260 = vadd.f32 %v194, %v256
    %v261 = vadd.f32 %v195, %v257
    %v262 = vadd.f32 %v196, %v258
    %s263 = sld [smem:[#allocation5 + $0x1e]]
    %v264 = vstv %s263
    %v265 = vmul.f32 %v264, %v249
    %v266 = vmul.f32 %v264, %v250
    %v267 = vmul.f32 %v264, %v251
    %v268 = vmul.f32 %v264, %v252
    %v269 = vadd.f32 %v219, %v265
    %v270 = vadd.f32 %v220, %v266
    %v271 = vadd.f32 %v221, %v267
    %v272 = vadd.f32 %v222, %v268
    %s273 = sld [smem:[#allocation5 + $0x39]]
    %v274 = vstv %s273
    %v275 = vmul.f32 %v274, %v249
    %v276 = vmul.f32 %v274, %v250
    %v277 = vmul.f32 %v274, %v251
    %v278 = vmul.f32 %v274, %v252
    %v279 = vadd.f32 %v245, %v275
    %v280 = vadd.f32 %v246, %v276
    %v281 = vadd.f32 %v247, %v277
    %v282 = vadd.f32 %v248, %v278
    %s283 = sld [smem:[#allocation5 + $0x4]]
    %v284 = vstv %s283
    %v285 = vmul.f32 %v284, %v249
    %v286 = vmul.f32 %v284, %v250
    %v287 = vmul.f32 %v284, %v251
    %v288 = vmul.f32 %v284, %v252
    %293 = vrot.lane.b32.xlu0 %v285, 127
    %v294 = vpop.permute.xlu0 %293
    %295 = vrot.lane.b32.xlu0 %v286, 127
    %v296 = vpop.permute.xlu0 %295
    %297 = vrot.lane.b32.xlu0 %v287, 127
    %v298 = vpop.permute.xlu0 %297
    %299 = vrot.lane.b32.xlu0 %v288, 127
    %v300 = vpop.permute.xlu0 %299
    %v305 = vadd.f32 %v259, %v294
    %v306 = vadd.f32 %v260, %v296
    %v307 = vadd.f32 %v261, %v298
    %v308 = vadd.f32 %v262, %v300
    %s309 = sld [smem:[#allocation5 + $0x1f]]
    %v310 = vstv %s309
    %v311 = vmul.f32 %v310, %v249
    %v312 = vmul.f32 %v310, %v250
    %v313 = vmul.f32 %v310, %v251
    %v314 = vmul.f32 %v310, %v252
    %319 = vrot.lane.b32.xlu0 %v311, 127
    %v320 = vpop.permute.xlu0 %319
    %321 = vrot.lane.b32.xlu0 %v312, 127
    %v322 = vpop.permute.xlu0 %321
    %323 = vrot.lane.b32.xlu0 %v313, 127
    %v324 = vpop.permute.xlu0 %323
    %325 = vrot.lane.b32.xlu0 %v314, 127
    %v326 = vpop.permute.xlu0 %325
    %v331 = vadd.f32 %v269, %v320
    %v332 = vadd.f32 %v270, %v322
    %v333 = vadd.f32 %v271, %v324
    %v334 = vadd.f32 %v272, %v326
    %s335 = sld [smem:[#allocation5 + $0x3a]]
    %v336 = vstv %s335
    %v337 = vmul.f32 %v336, %v249
    %v338 = vmul.f32 %v336, %v250
    %v339 = vmul.f32 %v336, %v251
    %v340 = vmul.f32 %v336, %v252
    %345 = vrot.lane.b32.xlu0 %v337, 127
    %v346 = vpop.permute.xlu0 %345
    %347 = vrot.lane.b32.xlu0 %v338, 127
    %v348 = vpop.permute.xlu0 %347
    %349 = vrot.lane.b32.xlu0 %v339, 127
    %v350 = vpop.permute.xlu0 %349
    %351 = vrot.lane.b32.xlu0 %v340, 127
    %v352 = vpop.permute.xlu0 %351
    %v357 = vadd.f32 %v279, %v346
    %v358 = vadd.f32 %v280, %v348
    %v359 = vadd.f32 %v281, %v350
    %v360 = vadd.f32 %v282, %v352
    %s361 = sld [smem:[#allocation5 + $0x5]]
    %v362 = vstv %s361
    %v363 = vmul.f32 %v362, %v249
    %v364 = vmul.f32 %v362, %v250
    %v365 = vmul.f32 %v362, %v251
    %v366 = vmul.f32 %v362, %v252
    %371 = vrot.lane.b32.xlu0 %v363, 126
    %v372 = vpop.permute.xlu0 %371
    %373 = vrot.lane.b32.xlu0 %v364, 126
    %v374 = vpop.permute.xlu0 %373
    %375 = vrot.lane.b32.xlu0 %v365, 126
    %v376 = vpop.permute.xlu0 %375
    %377 = vrot.lane.b32.xlu0 %v366, 126
    %v378 = vpop.permute.xlu0 %377
    %v383 = vadd.f32 %v305, %v372
    %v384 = vadd.f32 %v306, %v374
    %v385 = vadd.f32 %v307, %v376
    %v386 = vadd.f32 %v308, %v378
    %s387 = sld [smem:[#allocation5 + $0x20]]
    %v388 = vstv %s387
    %v389 = vmul.f32 %v388, %v249
    %v390 = vmul.f32 %v388, %v250
    %v391 = vmul.f32 %v388, %v251
    %v392 = vmul.f32 %v388, %v252
    %397 = vrot.lane.b32.xlu0 %v389, 126
    %v398 = vpop.permute.xlu0 %397
    %399 = vrot.lane.b32.xlu0 %v390, 126
    %v400 = vpop.permute.xlu0 %399
    %401 = vrot.lane.b32.xlu0 %v391, 126
    %v402 = vpop.permute.xlu0 %401
    %403 = vrot.lane.b32.xlu0 %v392, 126
    %v404 = vpop.permute.xlu0 %403
    %v409 = vadd.f32 %v331, %v398
    %v410 = vadd.f32 %v332, %v400
    %v411 = vadd.f32 %v333, %v402
    %v412 = vadd.f32 %v334, %v404
    %s413 = sld [smem:[#allocation5 + $0x3b]]
    %v414 = vstv %s413
    %v415 = vmul.f32 %v414, %v249
    %v416 = vmul.f32 %v414, %v250
    %v417 = vmul.f32 %v414, %v251
    %v418 = vmul.f32 %v414, %v252
    %423 = vrot.lane.b32.xlu0 %v415, 126
    %v424 = vpop.permute.xlu0 %423
    %425 = vrot.lane.b32.xlu0 %v416, 126
    %v426 = vpop.permute.xlu0 %425
    %427 = vrot.lane.b32.xlu0 %v417, 126
    %v428 = vpop.permute.xlu0 %427
    %429 = vrot.lane.b32.xlu0 %v418, 126
    %v430 = vpop.permute.xlu0 %429
    %v435 = vadd.f32 %v357, %v424
    %v436 = vadd.f32 %v358, %v426
    %v437 = vadd.f32 %v359, %v428
    %v438 = vadd.f32 %v360, %v430
    %v439 = vld [vmem:[#allocation2 + $0x2] sm:$0xff]
    %v440 = vld [vmem:[#allocation2 + $0xa] sm:$0xff]
    %v441 = vld [vmem:[#allocation2 + $0x12] sm:$0xff]
    %v442 = vld [vmem:[#allocation2 + $0x1a] sm:$0x3f]
    %s443 = sld [smem:[#allocation5 + $0x6]]
    %v444 = vstv %s443
    %v445 = vmul.f32 %v444, %v439
    %v446 = vmul.f32 %v444, %v440
    %v447 = vmul.f32 %v444, %v441
    %v448 = vmul.f32 %v444, %v442
    %v449 = vadd.f32 %v383, %v445
    %v450 = vadd.f32 %v384, %v446
    %v451 = vadd.f32 %v385, %v447
    %v452 = vadd.f32 %v386, %v448
    %s453 = sld [smem:[#allocation5 + $0x21]]
    %v454 = vstv %s453
    %v455 = vmul.f32 %v454, %v439
    %v456 = vmul.f32 %v454, %v440
    %v457 = vmul.f32 %v454, %v441
    %v458 = vmul.f32 %v454, %v442
    %v459 = vadd.f32 %v409, %v455
    %v460 = vadd.f32 %v410, %v456
    %v461 = vadd.f32 %v411, %v457
    %v462 = vadd.f32 %v412, %v458
    %s463 = sld [smem:[#allocation5 + $0x3c]]
    %v464 = vstv %s463
    %v465 = vmul.f32 %v464, %v439
    %v466 = vmul.f32 %v464, %v440
    %v467 = vmul.f32 %v464, %v441
    %v468 = vmul.f32 %v464, %v442
    %v469 = vadd.f32 %v435, %v465
    %v470 = vadd.f32 %v436, %v466
    %v471 = vadd.f32 %v437, %v467
    %v472 = vadd.f32 %v438, %v468
    %s473 = sld [smem:[#allocation5 + $0x7]]
    %v474 = vstv %s473
    %v475 = vmul.f32 %v474, %v439
    %v476 = vmul.f32 %v474, %v440
    %v477 = vmul.f32 %v474, %v441
    %v478 = vmul.f32 %v474, %v442
    %483 = vrot.lane.b32.xlu0 %v475, 127
    %v484 = vpop.permute.xlu0 %483
    %485 = vrot.lane.b32.xlu0 %v476, 127
    %v486 = vpop.permute.xlu0 %485
    %487 = vrot.lane.b32.xlu0 %v477, 127
    %v488 = vpop.permute.xlu0 %487
    %489 = vrot.lane.b32.xlu0 %v478, 127
    %v490 = vpop.permute.xlu0 %489
    %v495 = vadd.f32 %v449, %v484
    %v496 = vadd.f32 %v450, %v486
    %v497 = vadd.f32 %v451, %v488
    %v498 = vadd.f32 %v452, %v490
    %s499 = sld [smem:[#allocation5 + $0x22]]
    %v500 = vstv %s499
    %v501 = vmul.f32 %v500, %v439
    %v502 = vmul.f32 %v500, %v440
    %v503 = vmul.f32 %v500, %v441
    %v504 = vmul.f32 %v500, %v442
    %509 = vrot.lane.b32.xlu0 %v501, 127
    %v510 = vpop.permute.xlu0 %509
    %511 = vrot.lane.b32.xlu0 %v502, 127
    %v512 = vpop.permute.xlu0 %511
    %513 = vrot.lane.b32.xlu0 %v503, 127
    %v514 = vpop.permute.xlu0 %513
    %515 = vrot.lane.b32.xlu0 %v504, 127
    %v516 = vpop.permute.xlu0 %515
    %v521 = vadd.f32 %v459, %v510
    %v522 = vadd.f32 %v460, %v512
    %v523 = vadd.f32 %v461, %v514
    %v524 = vadd.f32 %v462, %v516
    %s525 = sld [smem:[#allocation5 + $0x3d]]
    %v526 = vstv %s525
    %v527 = vmul.f32 %v526, %v439
    %v528 = vmul.f32 %v526, %v440
    %v529 = vmul.f32 %v526, %v441
    %v530 = vmul.f32 %v526, %v442
    %535 = vrot.lane.b32.xlu0 %v527, 127
    %v536 = vpop.permute.xlu0 %535
    %537 = vrot.lane.b32.xlu0 %v528, 127
    %v538 = vpop.permute.xlu0 %537
    %539 = vrot.lane.b32.xlu0 %v529, 127
    %v540 = vpop.permute.xlu0 %539
    %541 = vrot.lane.b32.xlu0 %v530, 127
    %v542 = vpop.permute.xlu0 %541
    %v547 = vadd.f32 %v469, %v536
    %v548 = vadd.f32 %v470, %v538
    %v549 = vadd.f32 %v471, %v540
    %v550 = vadd.f32 %v472, %v542
    %s551 = sld [smem:[#allocation5 + $0x8]]
    %v552 = vstv %s551
    %v553 = vmul.f32 %v552, %v439
    %v554 = vmul.f32 %v552, %v440
    %v555 = vmul.f32 %v552, %v441
    %v556 = vmul.f32 %v552, %v442
    %561 = vrot.lane.b32.xlu0 %v553, 126
    %v562 = vpop.permute.xlu0 %561
    %563 = vrot.lane.b32.xlu0 %v554, 126
    %v564 = vpop.permute.xlu0 %563
    %565 = vrot.lane.b32.xlu0 %v555, 126
    %v566 = vpop.permute.xlu0 %565
    %567 = vrot.lane.b32.xlu0 %v556, 126
    %v568 = vpop.permute.xlu0 %567
    %v573 = vadd.f32 %v495, %v562
    %v574 = vadd.f32 %v496, %v564
    %v575 = vadd.f32 %v497, %v566
    %v576 = vadd.f32 %v498, %v568
    %s577 = sld [smem:[#allocation5 + $0x23]]
    %v578 = vstv %s577
    %v579 = vmul.f32 %v578, %v439
    %v580 = vmul.f32 %v578, %v440
    %v581 = vmul.f32 %v578, %v441
    %v582 = vmul.f32 %v578, %v442
    %587 = vrot.lane.b32.xlu0 %v579, 126
    %v588 = vpop.permute.xlu0 %587
    %589 = vrot.lane.b32.xlu0 %v580, 126
    %v590 = vpop.permute.xlu0 %589
    %591 = vrot.lane.b32.xlu0 %v581, 126
    %v592 = vpop.permute.xlu0 %591
    %593 = vrot.lane.b32.xlu0 %v582, 126
    %v594 = vpop.permute.xlu0 %593
    %v599 = vadd.f32 %v521, %v588
    %v600 = vadd.f32 %v522, %v590
    %v601 = vadd.f32 %v523, %v592
    %v602 = vadd.f32 %v524, %v594
    %s603 = sld [smem:[#allocation5 + $0x3e]]
    %v604 = vstv %s603
    %v605 = vmul.f32 %v604, %v439
    %v606 = vmul.f32 %v604, %v440
    %v607 = vmul.f32 %v604, %v441
    %v608 = vmul.f32 %v604, %v442
    %613 = vrot.lane.b32.xlu0 %v605, 126
    %v614 = vpop.permute.xlu0 %613
    %615 = vrot.lane.b32.xlu0 %v606, 126
    %v616 = vpop.permute.xlu0 %615
    %617 = vrot.lane.b32.xlu0 %v607, 126
    %v618 = vpop.permute.xlu0 %617
    %619 = vrot.lane.b32.xlu0 %v608, 126
    %v620 = vpop.permute.xlu0 %619
    %v625 = vadd.f32 %v547, %v614
    %v626 = vadd.f32 %v548, %v616
    %v627 = vadd.f32 %v549, %v618
    %v628 = vadd.f32 %v550, %v620
    %s629 = scalar_lea.vmem [#allocation2], 32
    %v630 = vld [vmem:[%s629] sm:$0xff]
    %v631 = vld [vmem:[%s629 + $0x8] sm:$0xff]
    %v632 = vld [vmem:[%s629 + $0x10] sm:$0xff]
    %v633 = vld [vmem:[%s629 + $0x18] sm:$0x3f]
    %s634 = sld [smem:[#allocation5 + $0x9]]
    %v635 = vstv %s634
    %v636 = vmul.f32 %v635, %v630
    %v637 = vmul.f32 %v635, %v631
    %v638 = vmul.f32 %v635, %v632
    %v639 = vmul.f32 %v635, %v633
    %v640 = vadd.f32 %v573, %v636
    %v641 = vadd.f32 %v574, %v637
    %v642 = vadd.f32 %v575, %v638
    %v643 = vadd.f32 %v576, %v639
    %s644 = sld [smem:[#allocation5 + $0x24]]
    %v645 = vstv %s644
    %v646 = vmul.f32 %v645, %v630
    %v647 = vmul.f32 %v645, %v631
    %v648 = vmul.f32 %v645, %v632
    %v649 = vmul.f32 %v645, %v633
    %v650 = vadd.f32 %v599, %v646
    %v651 = vadd.f32 %v600, %v647
    %v652 = vadd.f32 %v601, %v648
    %v653 = vadd.f32 %v602, %v649
    %s654 = sld [smem:[#allocation5 + $0x3f]]
    %v655 = vstv %s654
    %v656 = vmul.f32 %v655, %v630
    %v657 = vmul.f32 %v655, %v631
    %v658 = vmul.f32 %v655, %v632
    %v659 = vmul.f32 %v655, %v633
    %v660 = vadd.f32 %v625, %v656
    %v661 = vadd.f32 %v626, %v657
    %v662 = vadd.f32 %v627, %v658
    %v663 = vadd.f32 %v628, %v659
    %s664 = sld [smem:[#allocation5 + $0xa]]
    %v665 = vstv %s664
    %v666 = vmul.f32 %v665, %v630
    %v667 = vmul.f32 %v665, %v631
    %v668 = vmul.f32 %v665, %v632
    %v669 = vmul.f32 %v665, %v633
    %674 = vrot.lane.b32.xlu0 %v666, 127
    %v675 = vpop.permute.xlu0 %674
    %676 = vrot.lane.b32.xlu0 %v667, 127
    %v677 = vpop.permute.xlu0 %676
    %678 = vrot.lane.b32.xlu0 %v668, 127
    %v679 = vpop.permute.xlu0 %678
    %680 = vrot.lane.b32.xlu0 %v669, 127
    %v681 = vpop.permute.xlu0 %680
    %v686 = vadd.f32 %v640, %v675
    %v687 = vadd.f32 %v641, %v677
    %v688 = vadd.f32 %v642, %v679
    %v689 = vadd.f32 %v643, %v681
    %s690 = sld [smem:[#allocation5 + $0x25]]
    %v691 = vstv %s690
    %v692 = vmul.f32 %v691, %v630
    %v693 = vmul.f32 %v691, %v631
    %v694 = vmul.f32 %v691, %v632
    %v695 = vmul.f32 %v691, %v633
    %700 = vrot.lane.b32.xlu0 %v692, 127
    %v701 = vpop.permute.xlu0 %700
    %702 = vrot.lane.b32.xlu0 %v693, 127
    %v703 = vpop.permute.xlu0 %702
    %704 = vrot.lane.b32.xlu0 %v694, 127
    %v705 = vpop.permute.xlu0 %704
    %706 = vrot.lane.b32.xlu0 %v695, 127
    %v707 = vpop.permute.xlu0 %706
    %v712 = vadd.f32 %v650, %v701
    %v713 = vadd.f32 %v651, %v703
    %v714 = vadd.f32 %v652, %v705
    %v715 = vadd.f32 %v653, %v707
    %s716 = sld [smem:[#allocation5 + $0x40]]
    %v717 = vstv %s716
    %v718 = vmul.f32 %v717, %v630
    %v719 = vmul.f32 %v717, %v631
    %v720 = vmul.f32 %v717, %v632
    %v721 = vmul.f32 %v717, %v633
    %726 = vrot.lane.b32.xlu0 %v718, 127
    %v727 = vpop.permute.xlu0 %726
    %728 = vrot.lane.b32.xlu0 %v719, 127
    %v729 = vpop.permute.xlu0 %728
    %730 = vrot.lane.b32.xlu0 %v720, 127
    %v731 = vpop.permute.xlu0 %730
    %732 = vrot.lane.b32.xlu0 %v721, 127
    %v733 = vpop.permute.xlu0 %732
    %v738 = vadd.f32 %v660, %v727
    %v739 = vadd.f32 %v661, %v729
    %v740 = vadd.f32 %v662, %v731
    %v741 = vadd.f32 %v663, %v733
    %s742 = sld [smem:[#allocation5 + $0xb]]
    %v743 = vstv %s742
    %v744 = vmul.f32 %v743, %v630
    %v745 = vmul.f32 %v743, %v631
    %v746 = vmul.f32 %v743, %v632
    %v747 = vmul.f32 %v743, %v633
    %752 = vrot.lane.b32.xlu0 %v744, 126
    %v753 = vpop.permute.xlu0 %752
    %754 = vrot.lane.b32.xlu0 %v745, 126
    %v755 = vpop.permute.xlu0 %754
    %756 = vrot.lane.b32.xlu0 %v746, 126
    %v757 = vpop.permute.xlu0 %756
    %758 = vrot.lane.b32.xlu0 %v747, 126
    %v759 = vpop.permute.xlu0 %758
    %v764 = vadd.f32 %v686, %v753
    %v765 = vadd.f32 %v687, %v755
    %v766 = vadd.f32 %v688, %v757
    %v767 = vadd.f32 %v689, %v759
    %s768 = sld [smem:[#allocation5 + $0x26]]
    %v769 = vstv %s768
    %v770 = vmul.f32 %v769, %v630
    %v771 = vmul.f32 %v769, %v631
    %v772 = vmul.f32 %v769, %v632
    %v773 = vmul.f32 %v769, %v633
    %778 = vrot.lane.b32.xlu0 %v770, 126
    %v779 = vpop.permute.xlu0 %778
    %780 = vrot.lane.b32.xlu0 %v771, 126
    %v781 = vpop.permute.xlu0 %780
    %782 = vrot.lane.b32.xlu0 %v772, 126
    %v783 = vpop.permute.xlu0 %782
    %784 = vrot.lane.b32.xlu0 %v773, 126
    %v785 = vpop.permute.xlu0 %784
    %v790 = vadd.f32 %v712, %v779
    %v791 = vadd.f32 %v713, %v781
    %v792 = vadd.f32 %v714, %v783
    %v793 = vadd.f32 %v715, %v785
    %s794 = sld [smem:[#allocation5 + $0x41]]
    %v795 = vstv %s794
    %v796 = vmul.f32 %v795, %v630
    %v797 = vmul.f32 %v795, %v631
    %v798 = vmul.f32 %v795, %v632
    %v799 = vmul.f32 %v795, %v633
    %804 = vrot.lane.b32.xlu0 %v796, 126
    %v805 = vpop.permute.xlu0 %804
    %806 = vrot.lane.b32.xlu0 %v797, 126
    %v807 = vpop.permute.xlu0 %806
    %808 = vrot.lane.b32.xlu0 %v798, 126
    %v809 = vpop.permute.xlu0 %808
    %810 = vrot.lane.b32.xlu0 %v799, 126
    %v811 = vpop.permute.xlu0 %810
    %v816 = vadd.f32 %v738, %v805
    %v817 = vadd.f32 %v739, %v807
    %v818 = vadd.f32 %v740, %v809
    %v819 = vadd.f32 %v741, %v811
    %v820 = vld [vmem:[%s629 + $0x1] sm:$0xff]
    %v821 = vld [vmem:[%s629 + $0x9] sm:$0xff]
    %v822 = vld [vmem:[%s629 + $0x11] sm:$0xff]
    %v823 = vld [vmem:[%s629 + $0x19] sm:$0x3f]
    %s824 = sld [smem:[#allocation5 + $0xc]]
    %v825 = vstv %s824
    %v826 = vmul.f32 %v825, %v820
    %v827 = vmul.f32 %v825, %v821
    %v828 = vmul.f32 %v825, %v822
    %v829 = vmul.f32 %v825, %v823
    %v830 = vadd.f32 %v764, %v826
    %v831 = vadd.f32 %v765, %v827
    %v832 = vadd.f32 %v766, %v828
    %v833 = vadd.f32 %v767, %v829
    %s834 = sld [smem:[#allocation5 + $0x27]]
    %v835 = vstv %s834
    %v836 = vmul.f32 %v835, %v820
    %v837 = vmul.f32 %v835, %v821
    %v838 = vmul.f32 %v835, %v822
    %v839 = vmul.f32 %v835, %v823
    %v840 = vadd.f32 %v790, %v836
    %v841 = vadd.f32 %v791, %v837
    %v842 = vadd.f32 %v792, %v838
    %v843 = vadd.f32 %v793, %v839
    %s844 = sld [smem:[#allocation5 + $0x42]]
    %v845 = vstv %s844
    %v846 = vmul.f32 %v845, %v820
    %v847 = vmul.f32 %v845, %v821
    %v848 = vmul.f32 %v845, %v822
    %v849 = vmul.f32 %v845, %v823
    %v850 = vadd.f32 %v816, %v846
    %v851 = vadd.f32 %v817, %v847
    %v852 = vadd.f32 %v818, %v848
    %v853 = vadd.f32 %v819, %v849
    %s854 = sld [smem:[#allocation5 + $0xd]]
    %v855 = vstv %s854
    %v856 = vmul.f32 %v855, %v820
    %v857 = vmul.f32 %v855, %v821
    %v858 = vmul.f32 %v855, %v822
    %v859 = vmul.f32 %v855, %v823
    %864 = vrot.lane.b32.xlu0 %v856, 127
    %v865 = vpop.permute.xlu0 %864
    %866 = vrot.lane.b32.xlu0 %v857, 127
    %v867 = vpop.permute.xlu0 %866
    %868 = vrot.lane.b32.xlu0 %v858, 127
    %v869 = vpop.permute.xlu0 %868
    %870 = vrot.lane.b32.xlu0 %v859, 127
    %v871 = vpop.permute.xlu0 %870
    %v876 = vadd.f32 %v830, %v865
    %v877 = vadd.f32 %v831, %v867
    %v878 = vadd.f32 %v832, %v869
    %v879 = vadd.f32 %v833, %v871
    %s880 = sld [smem:[#allocation5 + $0x28]]
    %v881 = vstv %s880
    %v882 = vmul.f32 %v881, %v820
    %v883 = vmul.f32 %v881, %v821
    %v884 = vmul.f32 %v881, %v822
    %v885 = vmul.f32 %v881, %v823
    %890 = vrot.lane.b32.xlu0 %v882, 127
    %v891 = vpop.permute.xlu0 %890
    %892 = vrot.lane.b32.xlu0 %v883, 127
    %v893 = vpop.permute.xlu0 %892
    %894 = vrot.lane.b32.xlu0 %v884, 127
    %v895 = vpop.permute.xlu0 %894
    %896 = vrot.lane.b32.xlu0 %v885, 127
    %v897 = vpop.permute.xlu0 %896
    %v902 = vadd.f32 %v840, %v891
    %v903 = vadd.f32 %v841, %v893
    %v904 = vadd.f32 %v842, %v895
    %v905 = vadd.f32 %v843, %v897
    %s906 = sld [smem:[#allocation5 + $0x43]]
    %v907 = vstv %s906
    %v908 = vmul.f32 %v907, %v820
    %v909 = vmul.f32 %v907, %v821
    %v910 = vmul.f32 %v907, %v822
    %v911 = vmul.f32 %v907, %v823
    %916 = vrot.lane.b32.xlu0 %v908, 127
    %v917 = vpop.permute.xlu0 %916
    %918 = vrot.lane.b32.xlu0 %v909, 127
    %v919 = vpop.permute.xlu0 %918
    %920 = vrot.lane.b32.xlu0 %v910, 127
    %v921 = vpop.permute.xlu0 %920
    %922 = vrot.lane.b32.xlu0 %v911, 127
    %v923 = vpop.permute.xlu0 %922
    %v928 = vadd.f32 %v850, %v917
    %v929 = vadd.f32 %v851, %v919
    %v930 = vadd.f32 %v852, %v921
    %v931 = vadd.f32 %v853, %v923
    %s932 = sld [smem:[#allocation5 + $0xe]]
    %v933 = vstv %s932
    %v934 = vmul.f32 %v933, %v820
    %v935 = vmul.f32 %v933, %v821
    %v936 = vmul.f32 %v933, %v822
    %v937 = vmul.f32 %v933, %v823
    %942 = vrot.lane.b32.xlu0 %v934, 126
    %v943 = vpop.permute.xlu0 %942
    %944 = vrot.lane.b32.xlu0 %v935, 126
    %v945 = vpop.permute.xlu0 %944
    %946 = vrot.lane.b32.xlu0 %v936, 126
    %v947 = vpop.permute.xlu0 %946
    %948 = vrot.lane.b32.xlu0 %v937, 126
    %v949 = vpop.permute.xlu0 %948
    %v954 = vadd.f32 %v876, %v943
    %v955 = vadd.f32 %v877, %v945
    %v956 = vadd.f32 %v878, %v947
    %v957 = vadd.f32 %v879, %v949
    %s958 = sld [smem:[#allocation5 + $0x29]]
    %v959 = vstv %s958
    %v960 = vmul.f32 %v959, %v820
    %v961 = vmul.f32 %v959, %v821
    %v962 = vmul.f32 %v959, %v822
    %v963 = vmul.f32 %v959, %v823
    %968 = vrot.lane.b32.xlu0 %v960, 126
    %v969 = vpop.permute.xlu0 %968
    %970 = vrot.lane.b32.xlu0 %v961, 126
    %v971 = vpop.permute.xlu0 %970
    %972 = vrot.lane.b32.xlu0 %v962, 126
    %v973 = vpop.permute.xlu0 %972
    %974 = vrot.lane.b32.xlu0 %v963, 126
    %v975 = vpop.permute.xlu0 %974
    %v980 = vadd.f32 %v902, %v969
    %v981 = vadd.f32 %v903, %v971
    %v982 = vadd.f32 %v904, %v973
    %v983 = vadd.f32 %v905, %v975
    %s984 = sld [smem:[#allocation5 + $0x44]]
    %v985 = vstv %s984
    %v986 = vmul.f32 %v985, %v820
    %v987 = vmul.f32 %v985, %v821
    %v988 = vmul.f32 %v985, %v822
    %v989 = vmul.f32 %v985, %v823
    %994 = vrot.lane.b32.xlu0 %v986, 126
    %v995 = vpop.permute.xlu0 %994
    %996 = vrot.lane.b32.xlu0 %v987, 126
    %v997 = vpop.permute.xlu0 %996
    %998 = vrot.lane.b32.xlu0 %v988, 126
    %v999 = vpop.permute.xlu0 %998
    %1000 = vrot.lane.b32.xlu0 %v989, 126
    %v1001 = vpop.permute.xlu0 %1000
    %v1006 = vadd.f32 %v928, %v995
    %v1007 = vadd.f32 %v929, %v997
    %v1008 = vadd.f32 %v930, %v999
    %v1009 = vadd.f32 %v931, %v1001
    %v1010 = vld [vmem:[%s629 + $0x2] sm:$0xff]
    %v1011 = vld [vmem:[%s629 + $0xa] sm:$0xff]
    %v1012 = vld [vmem:[%s629 + $0x12] sm:$0xff]
    %v1013 = vld [vmem:[%s629 + $0x1a] sm:$0x3f]
    %s1014 = sld [smem:[#allocation5 + $0xf]]
    %v1015 = vstv %s1014
    %v1016 = vmul.f32 %v1015, %v1010
    %v1017 = vmul.f32 %v1015, %v1011
    %v1018 = vmul.f32 %v1015, %v1012
    %v1019 = vmul.f32 %v1015, %v1013
    %v1020 = vadd.f32 %v954, %v1016
    %v1021 = vadd.f32 %v955, %v1017
    %v1022 = vadd.f32 %v956, %v1018
    %v1023 = vadd.f32 %v957, %v1019
    %s1024 = sld [smem:[#allocation5 + $0x2a]]
    %v1025 = vstv %s1024
    %v1026 = vmul.f32 %v1025, %v1010
    %v1027 = vmul.f32 %v1025, %v1011
    %v1028 = vmul.f32 %v1025, %v1012
    %v1029 = vmul.f32 %v1025, %v1013
    %v1030 = vadd.f32 %v980, %v1026
    %v1031 = vadd.f32 %v981, %v1027
    %v1032 = vadd.f32 %v982, %v1028
    %v1033 = vadd.f32 %v983, %v1029
    %s1034 = sld [smem:[#allocation5 + $0x45]]
    %v1035 = vstv %s1034
    %v1036 = vmul.f32 %v1035, %v1010
    %v1037 = vmul.f32 %v1035, %v1011
    %v1038 = vmul.f32 %v1035, %v1012
    %v1039 = vmul.f32 %v1035, %v1013
    %v1040 = vadd.f32 %v1006, %v1036
    %v1041 = vadd.f32 %v1007, %v1037
    %v1042 = vadd.f32 %v1008, %v1038
    %v1043 = vadd.f32 %v1009, %v1039
    %s1044 = sld [smem:[#allocation5 + $0x10]]
    %v1045 = vstv %s1044
    %v1046 = vmul.f32 %v1045, %v1010
    %v1047 = vmul.f32 %v1045, %v1011
    %v1048 = vmul.f32 %v1045, %v1012
    %v1049 = vmul.f32 %v1045, %v1013
    %1054 = vrot.lane.b32.xlu0 %v1046, 127
    %v1055 = vpop.permute.xlu0 %1054
    %1056 = vrot.lane.b32.xlu0 %v1047, 127
    %v1057 = vpop.permute.xlu0 %1056
    %1058 = vrot.lane.b32.xlu0 %v1048, 127
    %v1059 = vpop.permute.xlu0 %1058
    %1060 = vrot.lane.b32.xlu0 %v1049, 127
    %v1061 = vpop.permute.xlu0 %1060
    %v1066 = vadd.f32 %v1020, %v1055
    %v1067 = vadd.f32 %v1021, %v1057
    %v1068 = vadd.f32 %v1022, %v1059
    %v1069 = vadd.f32 %v1023, %v1061
    %s1070 = sld [smem:[#allocation5 + $0x2b]]
    %v1071 = vstv %s1070
    %v1072 = vmul.f32 %v1071, %v1010
    %v1073 = vmul.f32 %v1071, %v1011
    %v1074 = vmul.f32 %v1071, %v1012
    %v1075 = vmul.f32 %v1071, %v1013
    %1080 = vrot.lane.b32.xlu0 %v1072, 127
    %v1081 = vpop.permute.xlu0 %1080
    %1082 = vrot.lane.b32.xlu0 %v1073, 127
    %v1083 = vpop.permute.xlu0 %1082
    %1084 = vrot.lane.b32.xlu0 %v1074, 127
    %v1085 = vpop.permute.xlu0 %1084
    %1086 = vrot.lane.b32.xlu0 %v1075, 127
    %v1087 = vpop.permute.xlu0 %1086
    %v1092 = vadd.f32 %v1030, %v1081
    %v1093 = vadd.f32 %v1031, %v1083
    %v1094 = vadd.f32 %v1032, %v1085
    %v1095 = vadd.f32 %v1033, %v1087
    %s1096 = sld [smem:[#allocation5 + $0x46]]
    %v1097 = vstv %s1096
    %v1098 = vmul.f32 %v1097, %v1010
    %v1099 = vmul.f32 %v1097, %v1011
    %v1100 = vmul.f32 %v1097, %v1012
    %v1101 = vmul.f32 %v1097, %v1013
    %1106 = vrot.lane.b32.xlu0 %v1098, 127
    %v1107 = vpop.permute.xlu0 %1106
    %1108 = vrot.lane.b32.xlu0 %v1099, 127
    %v1109 = vpop.permute.xlu0 %1108
    %1110 = vrot.lane.b32.xlu0 %v1100, 127
    %v1111 = vpop.permute.xlu0 %1110
    %1112 = vrot.lane.b32.xlu0 %v1101, 127
    %v1113 = vpop.permute.xlu0 %1112
    %v1118 = vadd.f32 %v1040, %v1107
    %v1119 = vadd.f32 %v1041, %v1109
    %v1120 = vadd.f32 %v1042, %v1111
    %v1121 = vadd.f32 %v1043, %v1113
    %s1122 = sld [smem:[#allocation5 + $0x11]]
    %v1123 = vstv %s1122
    %v1124 = vmul.f32 %v1123, %v1010
    %v1125 = vmul.f32 %v1123, %v1011
    %v1126 = vmul.f32 %v1123, %v1012
    %v1127 = vmul.f32 %v1123, %v1013
    %1132 = vrot.lane.b32.xlu0 %v1124, 126
    %v1133 = vpop.permute.xlu0 %1132
    %1134 = vrot.lane.b32.xlu0 %v1125, 126
    %v1135 = vpop.permute.xlu0 %1134
    %1136 = vrot.lane.b32.xlu0 %v1126, 126
    %v1137 = vpop.permute.xlu0 %1136
    %1138 = vrot.lane.b32.xlu0 %v1127, 126
    %v1139 = vpop.permute.xlu0 %1138
    %v1144 = vadd.f32 %v1066, %v1133
    %v1145 = vadd.f32 %v1067, %v1135
    %v1146 = vadd.f32 %v1068, %v1137
    %v1147 = vadd.f32 %v1069, %v1139
    %s1148 = sld [smem:[#allocation5 + $0x2c]]
    %v1149 = vstv %s1148
    %v1150 = vmul.f32 %v1149, %v1010
    %v1151 = vmul.f32 %v1149, %v1011
    %v1152 = vmul.f32 %v1149, %v1012
    %v1153 = vmul.f32 %v1149, %v1013
    %1158 = vrot.lane.b32.xlu0 %v1150, 126
    %v1159 = vpop.permute.xlu0 %1158
    %1160 = vrot.lane.b32.xlu0 %v1151, 126
    %v1161 = vpop.permute.xlu0 %1160
    %1162 = vrot.lane.b32.xlu0 %v1152, 126
    %v1163 = vpop.permute.xlu0 %1162
    %1164 = vrot.lane.b32.xlu0 %v1153, 126
    %v1165 = vpop.permute.xlu0 %1164
    %v1170 = vadd.f32 %v1092, %v1159
    %v1171 = vadd.f32 %v1093, %v1161
    %v1172 = vadd.f32 %v1094, %v1163
    %v1173 = vadd.f32 %v1095, %v1165
    %s1174 = sld [smem:[#allocation5 + $0x47]]
    %v1175 = vstv %s1174
    %v1176 = vmul.f32 %v1175, %v1010
    %v1177 = vmul.f32 %v1175, %v1011
    %v1178 = vmul.f32 %v1175, %v1012
    %v1179 = vmul.f32 %v1175, %v1013
    %1184 = vrot.lane.b32.xlu0 %v1176, 126
    %v1185 = vpop.permute.xlu0 %1184
    %1186 = vrot.lane.b32.xlu0 %v1177, 126
    %v1187 = vpop.permute.xlu0 %1186
    %1188 = vrot.lane.b32.xlu0 %v1178, 126
    %v1189 = vpop.permute.xlu0 %1188
    %1190 = vrot.lane.b32.xlu0 %v1179, 126
    %v1191 = vpop.permute.xlu0 %1190
    %v1196 = vadd.f32 %v1118, %v1185
    %v1197 = vadd.f32 %v1119, %v1187
    %v1198 = vadd.f32 %v1120, %v1189
    %v1199 = vadd.f32 %v1121, %v1191
    %s1200 = scalar_lea.vmem [#allocation2], 64
    %v1201 = vld [vmem:[%s1200] sm:$0xff]
    %v1202 = vld [vmem:[%s1200 + $0x8] sm:$0xff]
    %v1203 = vld [vmem:[%s1200 + $0x10] sm:$0xff]
    %v1204 = vld [vmem:[%s1200 + $0x18] sm:$0x3f]
    %s1205 = sld [smem:[#allocation5 + $0x12]]
    %v1206 = vstv %s1205
    %v1207 = vmul.f32 %v1206, %v1201
    %v1208 = vmul.f32 %v1206, %v1202
    %v1209 = vmul.f32 %v1206, %v1203
    %v1210 = vmul.f32 %v1206, %v1204
    %v1211 = vadd.f32 %v1144, %v1207
    %v1212 = vadd.f32 %v1145, %v1208
    %v1213 = vadd.f32 %v1146, %v1209
    %v1214 = vadd.f32 %v1147, %v1210
    %s1215 = sld [smem:[#allocation5 + $0x2d]]
    %v1216 = vstv %s1215
    %v1217 = vmul.f32 %v1216, %v1201
    %v1218 = vmul.f32 %v1216, %v1202
    %v1219 = vmul.f32 %v1216, %v1203
    %v1220 = vmul.f32 %v1216, %v1204
    %v1221 = vadd.f32 %v1170, %v1217
    %v1222 = vadd.f32 %v1171, %v1218
    %v1223 = vadd.f32 %v1172, %v1219
    %v1224 = vadd.f32 %v1173, %v1220
    %s1225 = sld [smem:[#allocation5 + $0x48]]
    %v1226 = vstv %s1225
    %v1227 = vmul.f32 %v1226, %v1201
    %v1228 = vmul.f32 %v1226, %v1202
    %v1229 = vmul.f32 %v1226, %v1203
    %v1230 = vmul.f32 %v1226, %v1204
    %v1231 = vadd.f32 %v1196, %v1227
    %v1232 = vadd.f32 %v1197, %v1228
    %v1233 = vadd.f32 %v1198, %v1229
    %v1234 = vadd.f32 %v1199, %v1230
    %s1235 = sld [smem:[#allocation5 + $0x13]]
    %v1236 = vstv %s1235
    %v1237 = vmul.f32 %v1236, %v1201
    %v1238 = vmul.f32 %v1236, %v1202
    %v1239 = vmul.f32 %v1236, %v1203
    %v1240 = vmul.f32 %v1236, %v1204
    %1245 = vrot.lane.b32.xlu0 %v1237, 127
    %v1246 = vpop.permute.xlu0 %1245
    %1247 = vrot.lane.b32.xlu0 %v1238, 127
    %v1248 = vpop.permute.xlu0 %1247
    %1249 = vrot.lane.b32.xlu0 %v1239, 127
    %v1250 = vpop.permute.xlu0 %1249
    %1251 = vrot.lane.b32.xlu0 %v1240, 127
    %v1252 = vpop.permute.xlu0 %1251
    %v1257 = vadd.f32 %v1211, %v1246
    %v1258 = vadd.f32 %v1212, %v1248
    %v1259 = vadd.f32 %v1213, %v1250
    %v1260 = vadd.f32 %v1214, %v1252
    %s1261 = sld [smem:[#allocation5 + $0x2e]]
    %v1262 = vstv %s1261
    %v1263 = vmul.f32 %v1262, %v1201
    %v1264 = vmul.f32 %v1262, %v1202
    %v1265 = vmul.f32 %v1262, %v1203
    %v1266 = vmul.f32 %v1262, %v1204
    %1271 = vrot.lane.b32.xlu0 %v1263, 127
    %v1272 = vpop.permute.xlu0 %1271
    %1273 = vrot.lane.b32.xlu0 %v1264, 127
    %v1274 = vpop.permute.xlu0 %1273
    %1275 = vrot.lane.b32.xlu0 %v1265, 127
    %v1276 = vpop.permute.xlu0 %1275
    %1277 = vrot.lane.b32.xlu0 %v1266, 127
    %v1278 = vpop.permute.xlu0 %1277
    %v1283 = vadd.f32 %v1221, %v1272
    %v1284 = vadd.f32 %v1222, %v1274
    %v1285 = vadd.f32 %v1223, %v1276
    %v1286 = vadd.f32 %v1224, %v1278
    %s1287 = sld [smem:[#allocation5 + $0x49]]
    %v1288 = vstv %s1287
    %v1289 = vmul.f32 %v1288, %v1201
    %v1290 = vmul.f32 %v1288, %v1202
    %v1291 = vmul.f32 %v1288, %v1203
    %v1292 = vmul.f32 %v1288, %v1204
    %1297 = vrot.lane.b32.xlu0 %v1289, 127
    %v1298 = vpop.permute.xlu0 %1297
    %1299 = vrot.lane.b32.xlu0 %v1290, 127
    %v1300 = vpop.permute.xlu0 %1299
    %1301 = vrot.lane.b32.xlu0 %v1291, 127
    %v1302 = vpop.permute.xlu0 %1301
    %1303 = vrot.lane.b32.xlu0 %v1292, 127
    %v1304 = vpop.permute.xlu0 %1303
    %v1309 = vadd.f32 %v1231, %v1298
    %v1310 = vadd.f32 %v1232, %v1300
    %v1311 = vadd.f32 %v1233, %v1302
    %v1312 = vadd.f32 %v1234, %v1304
    %s1313 = sld [smem:[#allocation5 + $0x14]]
    %v1314 = vstv %s1313
    %v1315 = vmul.f32 %v1314, %v1201
    %v1316 = vmul.f32 %v1314, %v1202
    %v1317 = vmul.f32 %v1314, %v1203
    %v1318 = vmul.f32 %v1314, %v1204
    %1323 = vrot.lane.b32.xlu0 %v1315, 126
    %v1324 = vpop.permute.xlu0 %1323
    %1325 = vrot.lane.b32.xlu0 %v1316, 126
    %v1326 = vpop.permute.xlu0 %1325
    %1327 = vrot.lane.b32.xlu0 %v1317, 126
    %v1328 = vpop.permute.xlu0 %1327
    %1329 = vrot.lane.b32.xlu0 %v1318, 126
    %v1330 = vpop.permute.xlu0 %1329
    %v1335 = vadd.f32 %v1257, %v1324
    %v1336 = vadd.f32 %v1258, %v1326
    %v1337 = vadd.f32 %v1259, %v1328
    %v1338 = vadd.f32 %v1260, %v1330
    %s1339 = sld [smem:[#allocation5 + $0x2f]]
    %v1340 = vstv %s1339
    %v1341 = vmul.f32 %v1340, %v1201
    %v1342 = vmul.f32 %v1340, %v1202
    %v1343 = vmul.f32 %v1340, %v1203
    %v1344 = vmul.f32 %v1340, %v1204
    %1349 = vrot.lane.b32.xlu0 %v1341, 126
    %v1350 = vpop.permute.xlu0 %1349
    %1351 = vrot.lane.b32.xlu0 %v1342, 126
    %v1352 = vpop.permute.xlu0 %1351
    %1353 = vrot.lane.b32.xlu0 %v1343, 126
    %v1354 = vpop.permute.xlu0 %1353
    %1355 = vrot.lane.b32.xlu0 %v1344, 126
    %v1356 = vpop.permute.xlu0 %1355
    %v1361 = vadd.f32 %v1283, %v1350
    %v1362 = vadd.f32 %v1284, %v1352
    %v1363 = vadd.f32 %v1285, %v1354
    %v1364 = vadd.f32 %v1286, %v1356
    %s1365 = sld [smem:[#allocation5 + $0x4a]]
    %v1366 = vstv %s1365
    %v1367 = vmul.f32 %v1366, %v1201
    %v1368 = vmul.f32 %v1366, %v1202
    %v1369 = vmul.f32 %v1366, %v1203
    %v1370 = vmul.f32 %v1366, %v1204
    %1375 = vrot.lane.b32.xlu0 %v1367, 126
    %v1376 = vpop.permute.xlu0 %1375
    %1377 = vrot.lane.b32.xlu0 %v1368, 126
    %v1378 = vpop.permute.xlu0 %1377
    %1379 = vrot.lane.b32.xlu0 %v1369, 126
    %v1380 = vpop.permute.xlu0 %1379
    %1381 = vrot.lane.b32.xlu0 %v1370, 126
    %v1382 = vpop.permute.xlu0 %1381
    %v1387 = vadd.f32 %v1309, %v1376
    %v1388 = vadd.f32 %v1310, %v1378
    %v1389 = vadd.f32 %v1311, %v1380
    %v1390 = vadd.f32 %v1312, %v1382
    %v1391 = vld [vmem:[%s1200 + $0x1] sm:$0xff]
    %v1392 = vld [vmem:[%s1200 + $0x9] sm:$0xff]
    %v1393 = vld [vmem:[%s1200 + $0x11] sm:$0xff]
    %v1394 = vld [vmem:[%s1200 + $0x19] sm:$0x3f]
    %s1395 = sld [smem:[#allocation5 + $0x15]]
    %v1396 = vstv %s1395
    %v1397 = vmul.f32 %v1396, %v1391
    %v1398 = vmul.f32 %v1396, %v1392
    %v1399 = vmul.f32 %v1396, %v1393
    %v1400 = vmul.f32 %v1396, %v1394
    %v1401 = vadd.f32 %v1335, %v1397
    %v1402 = vadd.f32 %v1336, %v1398
    %v1403 = vadd.f32 %v1337, %v1399
    %v1404 = vadd.f32 %v1338, %v1400
    %s1405 = sld [smem:[#allocation5 + $0x30]]
    %v1406 = vstv %s1405
    %v1407 = vmul.f32 %v1406, %v1391
    %v1408 = vmul.f32 %v1406, %v1392
    %v1409 = vmul.f32 %v1406, %v1393
    %v1410 = vmul.f32 %v1406, %v1394
    %v1411 = vadd.f32 %v1361, %v1407
    %v1412 = vadd.f32 %v1362, %v1408
    %v1413 = vadd.f32 %v1363, %v1409
    %v1414 = vadd.f32 %v1364, %v1410
    %s1415 = sld [smem:[#allocation5 + $0x4b]]
    %v1416 = vstv %s1415
    %v1417 = vmul.f32 %v1416, %v1391
    %v1418 = vmul.f32 %v1416, %v1392
    %v1419 = vmul.f32 %v1416, %v1393
    %v1420 = vmul.f32 %v1416, %v1394
    %v1421 = vadd.f32 %v1387, %v1417
    %v1422 = vadd.f32 %v1388, %v1418
    %v1423 = vadd.f32 %v1389, %v1419
    %v1424 = vadd.f32 %v1390, %v1420
    %s1425 = sld [smem:[#allocation5 + $0x16]]
    %v1426 = vstv %s1425
    %v1427 = vmul.f32 %v1426, %v1391
    %v1428 = vmul.f32 %v1426, %v1392
    %v1429 = vmul.f32 %v1426, %v1393
    %v1430 = vmul.f32 %v1426, %v1394
    %1435 = vrot.lane.b32.xlu0 %v1427, 127
    %v1436 = vpop.permute.xlu0 %1435
    %1437 = vrot.lane.b32.xlu0 %v1428, 127
    %v1438 = vpop.permute.xlu0 %1437
    %1439 = vrot.lane.b32.xlu0 %v1429, 127
    %v1440 = vpop.permute.xlu0 %1439
    %1441 = vrot.lane.b32.xlu0 %v1430, 127
    %v1442 = vpop.permute.xlu0 %1441
    %v1447 = vadd.f32 %v1401, %v1436
    %v1448 = vadd.f32 %v1402, %v1438
    %v1449 = vadd.f32 %v1403, %v1440
    %v1450 = vadd.f32 %v1404, %v1442
    %s1451 = sld [smem:[#allocation5 + $0x31]]
    %v1452 = vstv %s1451
    %v1453 = vmul.f32 %v1452, %v1391
    %v1454 = vmul.f32 %v1452, %v1392
    %v1455 = vmul.f32 %v1452, %v1393
    %v1456 = vmul.f32 %v1452, %v1394
    %1461 = vrot.lane.b32.xlu0 %v1453, 127
    %v1462 = vpop.permute.xlu0 %1461
    %1463 = vrot.lane.b32.xlu0 %v1454, 127
    %v1464 = vpop.permute.xlu0 %1463
    %1465 = vrot.lane.b32.xlu0 %v1455, 127
    %v1466 = vpop.permute.xlu0 %1465
    %1467 = vrot.lane.b32.xlu0 %v1456, 127
    %v1468 = vpop.permute.xlu0 %1467
    %v1473 = vadd.f32 %v1411, %v1462
    %v1474 = vadd.f32 %v1412, %v1464
    %v1475 = vadd.f32 %v1413, %v1466
    %v1476 = vadd.f32 %v1414, %v1468
    %s1477 = sld [smem:[#allocation5 + $0x4c]]
    %v1478 = vstv %s1477
    %v1479 = vmul.f32 %v1478, %v1391
    %v1480 = vmul.f32 %v1478, %v1392
    %v1481 = vmul.f32 %v1478, %v1393
    %v1482 = vmul.f32 %v1478, %v1394
    %1487 = vrot.lane.b32.xlu0 %v1479, 127
    %v1488 = vpop.permute.xlu0 %1487
    %1489 = vrot.lane.b32.xlu0 %v1480, 127
    %v1490 = vpop.permute.xlu0 %1489
    %1491 = vrot.lane.b32.xlu0 %v1481, 127
    %v1492 = vpop.permute.xlu0 %1491
    %1493 = vrot.lane.b32.xlu0 %v1482, 127
    %v1494 = vpop.permute.xlu0 %1493
    %v1499 = vadd.f32 %v1421, %v1488
    %v1500 = vadd.f32 %v1422, %v1490
    %v1501 = vadd.f32 %v1423, %v1492
    %v1502 = vadd.f32 %v1424, %v1494
    %s1503 = sld [smem:[#allocation5 + $0x17]]
    %v1504 = vstv %s1503
    %v1505 = vmul.f32 %v1504, %v1391
    %v1506 = vmul.f32 %v1504, %v1392
    %v1507 = vmul.f32 %v1504, %v1393
    %v1508 = vmul.f32 %v1504, %v1394
    %1513 = vrot.lane.b32.xlu0 %v1505, 126
    %v1514 = vpop.permute.xlu0 %1513
    %1515 = vrot.lane.b32.xlu0 %v1506, 126
    %v1516 = vpop.permute.xlu0 %1515
    %1517 = vrot.lane.b32.xlu0 %v1507, 126
    %v1518 = vpop.permute.xlu0 %1517
    %1519 = vrot.lane.b32.xlu0 %v1508, 126
    %v1520 = vpop.permute.xlu0 %1519
    %v1525 = vadd.f32 %v1447, %v1514
    %v1526 = vadd.f32 %v1448, %v1516
    %v1527 = vadd.f32 %v1449, %v1518
    %v1528 = vadd.f32 %v1450, %v1520
    %s1529 = sld [smem:[#allocation5 + $0x32]]
    %v1530 = vstv %s1529
    %v1531 = vmul.f32 %v1530, %v1391
    %v1532 = vmul.f32 %v1530, %v1392
    %v1533 = vmul.f32 %v1530, %v1393
    %v1534 = vmul.f32 %v1530, %v1394
    %1539 = vrot.lane.b32.xlu0 %v1531, 126
    %v1540 = vpop.permute.xlu0 %1539
    %1541 = vrot.lane.b32.xlu0 %v1532, 126
    %v1542 = vpop.permute.xlu0 %1541
    %1543 = vrot.lane.b32.xlu0 %v1533, 126
    %v1544 = vpop.permute.xlu0 %1543
    %1545 = vrot.lane.b32.xlu0 %v1534, 126
    %v1546 = vpop.permute.xlu0 %1545
    %v1551 = vadd.f32 %v1473, %v1540
    %v1552 = vadd.f32 %v1474, %v1542
    %v1553 = vadd.f32 %v1475, %v1544
    %v1554 = vadd.f32 %v1476, %v1546
    %s1555 = sld [smem:[#allocation5 + $0x4d]]
    %v1556 = vstv %s1555
    %v1557 = vmul.f32 %v1556, %v1391
    %v1558 = vmul.f32 %v1556, %v1392
    %v1559 = vmul.f32 %v1556, %v1393
    %v1560 = vmul.f32 %v1556, %v1394
    %1565 = vrot.lane.b32.xlu0 %v1557, 126
    %v1566 = vpop.permute.xlu0 %1565
    %1567 = vrot.lane.b32.xlu0 %v1558, 126
    %v1568 = vpop.permute.xlu0 %1567
    %1569 = vrot.lane.b32.xlu0 %v1559, 126
    %v1570 = vpop.permute.xlu0 %1569
    %1571 = vrot.lane.b32.xlu0 %v1560, 126
    %v1572 = vpop.permute.xlu0 %1571
    %v1577 = vadd.f32 %v1499, %v1566
    %v1578 = vadd.f32 %v1500, %v1568
    %v1579 = vadd.f32 %v1501, %v1570
    %v1580 = vadd.f32 %v1502, %v1572
    %v1581 = vld [vmem:[%s1200 + $0x2] sm:$0xff]
    %v1582 = vld [vmem:[%s1200 + $0xa] sm:$0xff]
    %v1583 = vld [vmem:[%s1200 + $0x12] sm:$0xff]
    %v1584 = vld [vmem:[%s1200 + $0x1a] sm:$0x3f]
    %s1585 = sld [smem:[#allocation5 + $0x18]]
    %v1586 = vstv %s1585
    %v1587 = vmul.f32 %v1586, %v1581
    %v1588 = vmul.f32 %v1586, %v1582
    %v1589 = vmul.f32 %v1586, %v1583
    %v1590 = vmul.f32 %v1586, %v1584
    %v1591 = vadd.f32 %v1525, %v1587
    %v1592 = vadd.f32 %v1526, %v1588
    %v1593 = vadd.f32 %v1527, %v1589
    %v1594 = vadd.f32 %v1528, %v1590
    %s1595 = sld [smem:[#allocation5 + $0x33]]
    %v1596 = vstv %s1595
    %v1597 = vmul.f32 %v1596, %v1581
    %v1598 = vmul.f32 %v1596, %v1582
    %v1599 = vmul.f32 %v1596, %v1583
    %v1600 = vmul.f32 %v1596, %v1584
    %v1601 = vadd.f32 %v1551, %v1597
    %v1602 = vadd.f32 %v1552, %v1598
    %v1603 = vadd.f32 %v1553, %v1599
    %v1604 = vadd.f32 %v1554, %v1600
    %s1605 = sld [smem:[#allocation5 + $0x4e]]
    %v1606 = vstv %s1605
    %v1607 = vmul.f32 %v1606, %v1581
    %v1608 = vmul.f32 %v1606, %v1582
    %v1609 = vmul.f32 %v1606, %v1583
    %v1610 = vmul.f32 %v1606, %v1584
    %v1611 = vadd.f32 %v1577, %v1607
    %v1612 = vadd.f32 %v1578, %v1608
    %v1613 = vadd.f32 %v1579, %v1609
    %v1614 = vadd.f32 %v1580, %v1610
    %s1615 = sld [smem:[#allocation5 + $0x19]]
    %v1616 = vstv %s1615
    %v1617 = vmul.f32 %v1616, %v1581
    %v1618 = vmul.f32 %v1616, %v1582
    %v1619 = vmul.f32 %v1616, %v1583
    %v1620 = vmul.f32 %v1616, %v1584
    %1625 = vrot.lane.b32.xlu0 %v1617, 127
    %v1626 = vpop.permute.xlu0 %1625
    %1627 = vrot.lane.b32.xlu0 %v1618, 127
    %v1628 = vpop.permute.xlu0 %1627
    %1629 = vrot.lane.b32.xlu0 %v1619, 127
    %v1630 = vpop.permute.xlu0 %1629
    %1631 = vrot.lane.b32.xlu0 %v1620, 127
    %v1632 = vpop.permute.xlu0 %1631
    %v1637 = vadd.f32 %v1591, %v1626
    %v1638 = vadd.f32 %v1592, %v1628
    %v1639 = vadd.f32 %v1593, %v1630
    %v1640 = vadd.f32 %v1594, %v1632
    %s1641 = sld [smem:[#allocation5 + $0x34]]
    %v1642 = vstv %s1641
    %v1643 = vmul.f32 %v1642, %v1581
    %v1644 = vmul.f32 %v1642, %v1582
    %v1645 = vmul.f32 %v1642, %v1583
    %v1646 = vmul.f32 %v1642, %v1584
    %1651 = vrot.lane.b32.xlu0 %v1643, 127
    %v1652 = vpop.permute.xlu0 %1651
    %1653 = vrot.lane.b32.xlu0 %v1644, 127
    %v1654 = vpop.permute.xlu0 %1653
    %1655 = vrot.lane.b32.xlu0 %v1645, 127
    %v1656 = vpop.permute.xlu0 %1655
    %1657 = vrot.lane.b32.xlu0 %v1646, 127
    %v1658 = vpop.permute.xlu0 %1657
    %v1663 = vadd.f32 %v1601, %v1652
    %v1664 = vadd.f32 %v1602, %v1654
    %v1665 = vadd.f32 %v1603, %v1656
    %v1666 = vadd.f32 %v1604, %v1658
    %s1667 = sld [smem:[#allocation5 + $0x4f]]
    %v1668 = vstv %s1667
    %v1669 = vmul.f32 %v1668, %v1581
    %v1670 = vmul.f32 %v1668, %v1582
    %v1671 = vmul.f32 %v1668, %v1583
    %v1672 = vmul.f32 %v1668, %v1584
    %1677 = vrot.lane.b32.xlu0 %v1669, 127
    %v1678 = vpop.permute.xlu0 %1677
    %1679 = vrot.lane.b32.xlu0 %v1670, 127
    %v1680 = vpop.permute.xlu0 %1679
    %1681 = vrot.lane.b32.xlu0 %v1671, 127
    %v1682 = vpop.permute.xlu0 %1681
    %1683 = vrot.lane.b32.xlu0 %v1672, 127
    %v1684 = vpop.permute.xlu0 %1683
    %v1689 = vadd.f32 %v1611, %v1678
    %v1690 = vadd.f32 %v1612, %v1680
    %v1691 = vadd.f32 %v1613, %v1682
    %v1692 = vadd.f32 %v1614, %v1684
    %s1693 = sld [smem:[#allocation5 + $0x1a]]
    %v1694 = vstv %s1693
    %v1695 = vmul.f32 %v1694, %v1581
    %v1696 = vmul.f32 %v1694, %v1582
    %v1697 = vmul.f32 %v1694, %v1583
    %v1698 = vmul.f32 %v1694, %v1584
    %1703 = vrot.lane.b32.xlu0 %v1695, 126
    %v1704 = vpop.permute.xlu0 %1703
    %1705 = vrot.lane.b32.xlu0 %v1696, 126
    %v1706 = vpop.permute.xlu0 %1705
    %1707 = vrot.lane.b32.xlu0 %v1697, 126
    %v1708 = vpop.permute.xlu0 %1707
    %1709 = vrot.lane.b32.xlu0 %v1698, 126
    %v1710 = vpop.permute.xlu0 %1709
    %v1715 = vadd.f32 %v1637, %v1704
    %v1716 = vadd.f32 %v1638, %v1706
    %v1717 = vadd.f32 %v1639, %v1708
    %v1718 = vadd.f32 %v1640, %v1710
    %s1719 = sld [smem:[#allocation5 + $0x35]]
    %v1720 = vstv %s1719
    %v1721 = vmul.f32 %v1720, %v1581
    %v1722 = vmul.f32 %v1720, %v1582
    %v1723 = vmul.f32 %v1720, %v1583
    %v1724 = vmul.f32 %v1720, %v1584
    %1729 = vrot.lane.b32.xlu0 %v1721, 126
    %v1730 = vpop.permute.xlu0 %1729
    %1731 = vrot.lane.b32.xlu0 %v1722, 126
    %v1732 = vpop.permute.xlu0 %1731
    %1733 = vrot.lane.b32.xlu0 %v1723, 126
    %v1734 = vpop.permute.xlu0 %1733
    %1735 = vrot.lane.b32.xlu0 %v1724, 126
    %v1736 = vpop.permute.xlu0 %1735
    %v1741 = vadd.f32 %v1663, %v1730
    %v1742 = vadd.f32 %v1664, %v1732
    %v1743 = vadd.f32 %v1665, %v1734
    %v1744 = vadd.f32 %v1666, %v1736
    %s1745 = sld [smem:[#allocation5 + $0x50]]
    %v1746 = vstv %s1745
    %v1747 = vmul.f32 %v1746, %v1581
    %v1748 = vmul.f32 %v1746, %v1582
    %v1749 = vmul.f32 %v1746, %v1583
    %v1750 = vmul.f32 %v1746, %v1584
    %1755 = vrot.lane.b32.xlu0 %v1747, 126
    %v1756 = vpop.permute.xlu0 %1755
    %1757 = vrot.lane.b32.xlu0 %v1748, 126
    %v1758 = vpop.permute.xlu0 %1757
    %1759 = vrot.lane.b32.xlu0 %v1749, 126
    %v1760 = vpop.permute.xlu0 %1759
    %1761 = vrot.lane.b32.xlu0 %v1750, 126
    %v1762 = vpop.permute.xlu0 %1761
    %v1767 = vadd.f32 %v1689, %v1756
    %v1768 = vadd.f32 %v1690, %v1758
    %v1769 = vadd.f32 %v1691, %v1760
    %v1770 = vadd.f32 %v1692, %v1762
    %v1771 = vmax.f32 %v1715, 0.0
    %v1772 = vmax.f32 %v1716, 0.0
    %v1773 = vmax.f32 %v1717, 0.0
    %v1774 = vmax.f32 %v1718, 0.0
    %v1775 = vmax.f32 %v1741, 0.0
    %v1776 = vmax.f32 %v1742, 0.0
    %v1777 = vmax.f32 %v1743, 0.0
    %v1778 = vmax.f32 %v1744, 0.0
    %v1779 = vmax.f32 %v1767, 0.0
    %v1780 = vmax.f32 %v1768, 0.0
    %v1781 = vmax.f32 %v1769, 0.0
    %v1782 = vmax.f32 %v1770, 0.0
    %vm1783 = vcmask 244736
    %1784 = vst.msk [vmem:[%s3] sm:$0xff] %vm1783, %v1771
    %1785 = vst.msk [vmem:[%s3 + $0x8] sm:$0xff] %vm1783, %v1772
    %1786 = vst.msk [vmem:[%s3 + $0x10] sm:$0xff] %vm1783, %v1773
    %vm1787 = vcmask 242688
    %1788 = vst.msk [vmem:[%s3 + $0x18] sm:$0x3f] %vm1787, %v1774
    %1789 = vst.msk [vmem:[%s3 + $0x20] sm:$0xff] %vm1783, %v1775
    %1790 = vst.msk [vmem:[%s3 + $0x28] sm:$0xff] %vm1783, %v1776
    %1791 = vst.msk [vmem:[%s3 + $0x30] sm:$0xff] %vm1783, %v1777
    %1792 = vst.msk [vmem:[%s3 + $0x38] sm:$0x3f] %vm1787, %v1778
    %1793 = vst.msk [vmem:[%s3 + $0x40] sm:$0xff] %vm1783, %v1779
    %1794 = vst.msk [vmem:[%s3 + $0x48] sm:$0xff] %vm1783, %v1780
    %1795 = vst.msk [vmem:[%s3 + $0x50] sm:$0xff] %vm1783, %v1781
    %1796 = vst.msk [vmem:[%s3 + $0x58] sm:$0x3f] %vm1787, %v1782
    // Predicated region
    $region26: #{conv2d_relu_pallas.1} parent=1 // pred_check
      _
    $region27: #{conv2d_relu_pallas.1} parent=1 // pred_check_branch
      %1798 = sbr.rel (0) target = $region29
    $region28: #{conv2d_relu_pallas.1} parent=1 // pred_region
      _
    $region29: #{conv2d_relu_pallas.1} parent=1 // pred_fallthru
      _
    // Predicated region
    $region30: #{conv2d_relu_pallas.1} parent=1 // pred_check
      _
    $region31: #{conv2d_relu_pallas.1} parent=1 // pred_check_branch
      %1800 = sbr.rel (0) target = $region33
    $region32: #{conv2d_relu_pallas.1} parent=1 // pred_region
      _
    $region33: #{conv2d_relu_pallas.1} parent=1 // pred_fallthru
      _
    %1801 = vsyncpa [#allocation3], 1
    %1802 = vsyncpa [#allocation4], 1
    %1803 = vsyncpa [#allocation7], 1

</llo_original>
